<compile_context>
chip_gen: v6e
topology: v6e:2x2x1
jax: 0.10.0
libtpu: 0.0.40
codegen_flags: <defaults>
</compile_context>

<pallas_src>
import jax
import jax.numpy as jnp
from jax.experimental import pallas as pl
from jax.experimental.pallas import tpu as pltpu


def _round_up(x, m):
    return (x + m - 1) // m * m


def encoder_kernel(x_ref, w1_ref, b1_ref, w2_ref, b2_ref, o_ref):
    # Cast x to bf16 in-kernel (VALU slot has slack; avoids a wrapper-side
    # padded bf16 staging copy through HBM).
    x = x_ref[...].astype(jnp.bfloat16)
    # Layer 1: Linear(784->256) + LeakyReLU(0.2).  bf16 operands, f32 accumulate.
    h = jnp.dot(x, w1_ref[...], preferred_element_type=jnp.float32)
    h = h + b1_ref[...]
    h = jnp.where(h > 0, h, 0.2 * h)
    # Layer 2: Linear(256->n_z) + LeakyReLU(0.2).
    z = jnp.dot(h.astype(jnp.bfloat16), w2_ref[...],
                preferred_element_type=jnp.float32)
    z = z + b2_ref[...]
    o_ref[...] = jnp.where(z > 0, z, 0.2 * z)


def _reference_bf16(x, w1, b1, w2, b2):
    """Same numerics as the kernel: bf16 matmul operands, f32 accumulation."""
    h = jnp.dot(x.astype(jnp.bfloat16), w1.astype(jnp.bfloat16),
                preferred_element_type=jnp.float32) + b1.reshape(1, -1).astype(jnp.float32)
    h = jnp.where(h > 0, h, 0.2 * h)
    z = jnp.dot(h.astype(jnp.bfloat16), w2.astype(jnp.bfloat16),
                preferred_element_type=jnp.float32) + b2.reshape(1, -1).astype(jnp.float32)
    return jnp.where(z > 0, z, 0.2 * z)


def prepare_params(w1, b1, w2, b2):
    """One-time cast/reshape of parameters (hoisted out of the per-call path)."""
    return (w1.astype(jnp.bfloat16),
            b1.reshape(1, -1).astype(jnp.float32),
            w2.astype(jnp.bfloat16),
            b2.reshape(1, -1).astype(jnp.float32))


def _pick_tile_b(B):
    # >= 256 rows fills the MXU M dimension; aim for >= 4 grid steps so both
    # v7x TensorCores get work plus a prefetch step each; cap at 1024 rows so a
    # double-buffered f32 x tile (~7 MiB) stays inside v5e's 16 MiB scoped VMEM.
    return max(256, min(1024, _round_up(max(B // 4, 1), 256)))


def encoder_forward(x, params, *, tile_b=None):
    """x: any shape reshapable to [B, 784]; params from prepare_params().

    Returns [B, n_z] f32.  Matmuls run with bf16 operands / f32 accumulation.
    """
    w1, b1_2d, w2, b2_2d = params
    x2 = x.reshape(-1, 784)
    B, f_in = x2.shape
    hdim = w1.shape[1]
    n_z = w2.shape[1]
    assert w1.shape[0] == f_in and w2.shape[0] == hdim

    # Defensive normalization (no-ops when params were prepared already).
    w1 = w1.astype(jnp.bfloat16)
    w2 = w2.astype(jnp.bfloat16)
    b1_2d = b1_2d.reshape(1, hdim).astype(jnp.float32)
    b2_2d = b2_2d.reshape(1, n_z).astype(jnp.float32)

    # Tiny batches: one underfilled MXU tile + launch overhead -> let XLA's
    # fused dot handle it (same bf16 numerics as the kernel).
    if B < 256:
        return _reference_bf16(x2, w1, b1_2d, w2, b2_2d)

    if tile_b is None:
        tile_b = _pick_tile_b(B)
    b_pad = _round_up(B, tile_b)

    # x goes straight into the kernel (f32, full 784-wide rows); only zero-pad
    # rows when B isn't a tile multiple.
    x_in = x2 if b_pad == B else jnp.zeros((b_pad, f_in), x2.dtype).at[:B].set(x2)

    grid = (b_pad // tile_b,)
    flops = 2 * b_pad * (f_in * hdim + hdim * n_z)
    bytes_accessed = (x_in.size * x_in.dtype.itemsize
                      + w1.size * 2 + w2.size * 2
                      + (b1_2d.size + b2_2d.size) * 4
                      + b_pad * n_z * 4)

    # NOTE: weights/biases have constant index_maps, so Pallas DMAs them once
    # and keeps them resident (~0.5 MiB); total footprint is a few MiB, well
    # under every generation's scoped-VMEM limit, so no single-buffering needed.
    out = pl.pallas_call(
        encoder_kernel,
        out_shape=jax.ShapeDtypeStruct((b_pad, n_z), jnp.float32),
        grid_spec=pltpu.PrefetchScalarGridSpec(
            num_scalar_prefetch=0,
            grid=grid,
            in_specs=[
                # x tile: full 784-wide rows (block last dim == array dim is legal).
                pl.BlockSpec((tile_b, f_in), lambda i: (i, 0)),
                pl.BlockSpec((f_in, hdim), lambda i: (0, 0)),   # W1 (resident)
                pl.BlockSpec((1, hdim), lambda i: (0, 0)),      # b1
                pl.BlockSpec((hdim, n_z), lambda i: (0, 0)),    # W2 (resident)
                pl.BlockSpec((1, n_z), lambda i: (0, 0)),       # b2
            ],
            out_specs=pl.BlockSpec((tile_b, n_z), lambda i: (i, 0)),
        ),
        compiler_params=pltpu.CompilerParams(
            dimension_semantics=("parallel",),   # shards batch tiles across TCs
            vmem_limit_bytes=32 * 1024 * 1024,
        ),
        cost_estimate=pl.CostEstimate(
            flops=flops, transcendentals=0, bytes_accessed=bytes_accessed),
    )(x_in, w1, b1_2d, w2, b2_2d)

    return out[:B] if b_pad != B else out


def init_params(key, n_z):
    """Deterministic init mirroring nn.Linear defaults (uniform +/- 1/sqrt(fan_in))."""
    k1, k2, k3, k4 = jax.random.split(key, 4)
    lim1 = 1.0 / jnp.sqrt(784.0)
    lim2 = 1.0 / jnp.sqrt(256.0)
    # Stored as [in, out] (transpose of PyTorch's [out, in]).
    w1 = jax.random.uniform(k1, (784, 256), jnp.float32, -lim1, lim1)
    b1 = jax.random.uniform(k2, (256,), jnp.float32, -lim1, lim1)
    w2 = jax.random.uniform(k3, (256, n_z), jnp.float32, -lim2, lim2)
    b2 = jax.random.uniform(k4, (n_z,), jnp.float32, -lim2, lim2)
    return w1, b1, w2, b2


if __name__ == "__main__":
    key = jax.random.PRNGKey(0)
    n_z = 32
    batch = 1024          # 4 grid steps of 256 rows -> 2 steps per TC on v7x
    kx, kp = jax.random.split(key)

    # Module does x.view(-1, 784): supply NCHW-like [B, 1, 28, 28].
    x_img = jax.random.normal(kx, (batch, 1, 28, 28), jnp.float32)

    w1, b1, w2, b2 = init_params(kp, n_z)
    params = prepare_params(w1, b1, w2, b2)   # one-time weight cast (hoisted)

    out = encoder_forward(x_img, params)
    out = jax.block_until_ready(out)

    ref = _reference_bf16(x_img.reshape(-1, 784), w1, b1, w2, b2)
    assert out.shape == (batch, n_z)
    assert jnp.allclose(out, ref, atol=2e-3, rtol=2e-3), float(
        jnp.max(jnp.abs(out - ref)))

    print("KERNEL_OK")
</pallas_src>

<mosaic_0001>
module attributes {stable_mosaic.version = 11 : i64} {
  func.func @encoder_kernel(%arg0: i32, %arg1: memref<256x784xf32, #tpu.memory_space<vmem>>, %arg2: memref<784x256xbf16, #tpu.memory_space<vmem>>, %arg3: memref<1x256xf32, #tpu.memory_space<vmem>>, %arg4: memref<256x32xbf16, #tpu.memory_space<vmem>>, %arg5: memref<1x32xf32, #tpu.memory_space<vmem>>, %arg6: memref<256x32xf32, #tpu.memory_space<vmem>>) attributes {dimension_semantics = [#tpu.dimension_semantics<parallel>], iteration_bounds = array<i64: 4>, scalar_prefetch = 0 : i64, scratch_operands = 0 : i64, tpu.core_type = #tpu.core_type<tc>, window_params = [{transform_indices = @transform_0, window_bounds = array<i64: 256, 784>}, {pipeline_mode = #tpu.pipeline_mode<synchronous>, transform_indices = @transform_1, window_bounds = array<i64: 784, 256>}, {pipeline_mode = #tpu.pipeline_mode<synchronous>, transform_indices = @transform_2, window_bounds = array<i64: 1, 256>}, {pipeline_mode = #tpu.pipeline_mode<synchronous>, transform_indices = @transform_3, window_bounds = array<i64: 256, 32>}, {pipeline_mode = #tpu.pipeline_mode<synchronous>, transform_indices = @transform_4, window_bounds = array<i64: 1, 32>}, {transform_indices = @transform_5, window_bounds = array<i64: 256, 32>}]} {
    %c0 = arith.constant 0 : index
    %c0_0 = arith.constant 0 : index
    %0 = vector.load %arg1[%c0, %c0_0] : memref<256x784xf32, #tpu.memory_space<vmem>>, vector<256x784xf32>
    %1 = arith.truncf %0 : vector<256x784xf32> to vector<256x784xbf16>
    %c0_1 = arith.constant 0 : index
    %c0_2 = arith.constant 0 : index
    %2 = vector.load %arg2[%c0_1, %c0_2] : memref<784x256xbf16, #tpu.memory_space<vmem>>, vector<784x256xbf16>
    %cst = arith.constant dense<0.000000e+00> : vector<256x256xf32>
    %3 = tpu.matmul %1, %2, %cst {dimension_numbers = #tpu.dot_dimension_numbers<[1], [0], [0], [1], [0, 0, 1, 1], [], []>} : vector<256x784xbf16>, vector<784x256xbf16>, vector<256x256xf32> -> vector<256x256xf32>
    %c0_3 = arith.constant 0 : index
    %c0_4 = arith.constant 0 : index
    %4 = vector.load %arg3[%c0_3, %c0_4] : memref<1x256xf32, #tpu.memory_space<vmem>>, vector<1x256xf32>
    %5 = vector.broadcast %4 : vector<1x256xf32> to vector<256x256xf32>
    %6 = arith.addf %3, %5 : vector<256x256xf32>
    %cst_5 = arith.constant 0.000000e+00 : f32
    %7 = vector.broadcast %cst_5 : f32 to vector<256x256xf32>
    %8 = arith.cmpf ogt, %6, %7 : vector<256x256xf32>
    %cst_6 = arith.constant 2.000000e-01 : f32
    %9 = vector.broadcast %cst_6 : f32 to vector<256x256xf32>
    %10 = arith.mulf %9, %6 : vector<256x256xf32>
    %11 = arith.select %8, %6, %10 : vector<256x256xi1>, vector<256x256xf32>
    %12 = arith.truncf %11 : vector<256x256xf32> to vector<256x256xbf16>
    %c0_7 = arith.constant 0 : index
    %c0_8 = arith.constant 0 : index
    %13 = vector.load %arg4[%c0_7, %c0_8] : memref<256x32xbf16, #tpu.memory_space<vmem>>, vector<256x32xbf16>
    %cst_9 = arith.constant dense<0.000000e+00> : vector<256x32xf32>
    %14 = tpu.matmul %12, %13, %cst_9 {dimension_numbers = #tpu.dot_dimension_numbers<[1], [0], [0], [1], [0, 0, 1, 1], [], []>} : vector<256x256xbf16>, vector<256x32xbf16>, vector<256x32xf32> -> vector<256x32xf32>
    %c0_10 = arith.constant 0 : index
    %c0_11 = arith.constant 0 : index
    %15 = vector.load %arg5[%c0_10, %c0_11] : memref<1x32xf32, #tpu.memory_space<vmem>>, vector<1x32xf32>
    %16 = vector.broadcast %15 : vector<1x32xf32> to vector<256x32xf32>
    %17 = arith.addf %14, %16 : vector<256x32xf32>
    %cst_12 = arith.constant 0.000000e+00 : f32
    %18 = vector.broadcast %cst_12 : f32 to vector<256x32xf32>
    %19 = arith.cmpf ogt, %17, %18 : vector<256x32xf32>
    %cst_13 = arith.constant 2.000000e-01 : f32
    %20 = vector.broadcast %cst_13 : f32 to vector<256x32xf32>
    %21 = arith.mulf %20, %17 : vector<256x32xf32>
    %22 = arith.select %19, %17, %21 : vector<256x32xi1>, vector<256x32xf32>
    %c0_14 = arith.constant 0 : index
    %c0_15 = arith.constant 0 : index
    %23 = vector.load %arg6[%c0_14, %c0_15] : memref<256x32xf32, #tpu.memory_space<vmem>>, vector<256x32xf32>
    tpu.vector_store %arg6[%c0_14, %c0_15], %22 {strides = array<i32>} : memref<256x32xf32, #tpu.memory_space<vmem>>, vector<256x32xf32>,
    return
  }
  func.func @transform_0(%arg0: i32) -> (i32, i32) {
    %c0_i32 = arith.constant 0 : i32
    %c0_i32_0 = arith.constant 0 : i32
    return %arg0, %c0_i32 : i32, i32
  }
  func.func @transform_1(%arg0: i32) -> (i32, i32) {
    %c0_i32 = arith.constant 0 : i32
    %c0_i32_0 = arith.constant 0 : i32
    %c0_i32_1 = arith.constant 0 : i32
    return %c0_i32, %c0_i32_0 : i32, i32
  }
  func.func @transform_2(%arg0: i32) -> (i32, i32) {
    %c0_i32 = arith.constant 0 : i32
    %c0_i32_0 = arith.constant 0 : i32
    %c0_i32_1 = arith.constant 0 : i32
    return %c0_i32, %c0_i32_0 : i32, i32
  }
  func.func @transform_3(%arg0: i32) -> (i32, i32) {
    %c0_i32 = arith.constant 0 : i32
    %c0_i32_0 = arith.constant 0 : i32
    %c0_i32_1 = arith.constant 0 : i32
    return %c0_i32, %c0_i32_0 : i32, i32
  }
  func.func @transform_4(%arg0: i32) -> (i32, i32) {
    %c0_i32 = arith.constant 0 : i32
    %c0_i32_0 = arith.constant 0 : i32
    %c0_i32_1 = arith.constant 0 : i32
    return %c0_i32, %c0_i32_0 : i32, i32
  }
  func.func @transform_5(%arg0: i32) -> (i32, i32) {
    %c0_i32 = arith.constant 0 : i32
    %c0_i32_0 = arith.constant 0 : i32
    return %arg0, %c0_i32 : i32, i32
  }
}

</mosaic_0001>

<llo_original>
// kernel: tpu_custom_call.1
$region0: #{tpu_custom_call.1}
  #allocation0 [shape = 'u32[]', space=smem, size = 0x4, offset = 0x4, fixed_abs, tag = 'smem constant byte address 0x4 - core index']
  #allocation1 [shape = 'u32[144,128]{1,0:T(1,128)}', space=vmem, size = 0x12000, scoped, tag = 'internal scratch']
  %s0 = inlined_call_operand.vmem [shape: f32[1024,784], index: 0, kind: input, shape index: {}]
  %s1 = inlined_call_operand.vmem [shape: bf16[784,256], index: 1, kind: input, shape index: {}]
  %s2 = inlined_call_operand.vmem [shape: f32[1,256], index: 2, kind: input, shape index: {}]
  %s3 = inlined_call_operand.vmem [shape: bf16[256,32], index: 3, kind: input, shape index: {}]
  %s4 = inlined_call_operand.vmem [shape: f32[1,32], index: 4, kind: input, shape index: {}]
  %s5 = inlined_call_operand.vmem [shape: f32[1024,32], index: 5, kind: output, shape index: {}]
  %s6 = sld [smem:[#allocation0]]
  $region53: #{tpu_custom_call.1} parent=0
    _
  %s8 = ssub.s32 1, %s6
  %s9 = scalar_select 0, %s8, %s6
  loop: start=0, step=1, limit=6
  $region2: #{tpu_custom_call.1} parent=0 // loop_pre_header
    _
  $region3: #{tpu_custom_call.1} parent=0 // loop_header
    %s11 = sphi 0, %s15
    %p12 = scmp.ge.s32.totalorder %s11, 6
    %s21 = sphi 0, %s23
    %s24 = sphi 0, %s21
    %s25 = sphi 0, %s24
    %s41 = sphi 0, %s25
    %s45 = sphi 0, %s45
    %s47 = sphi 0, %s45
    %s48 = sphi 0, %s47
    %s62 = sphi 0, %s48
    %s66 = sphi 0, %s66
    %s68 = sphi 0, %s66
    %s69 = sphi 0, %s68
    %s83 = sphi 0, %s69
    %s87 = sphi 0, %s87
    %s89 = sphi 0, %s87
    %s90 = sphi 0, %s89
    %s104 = sphi 0, %s90
    %s108 = sphi 0, %s108
    %s110 = sphi 0, %s108
    %s111 = sphi 0, %s110
    %s125 = sphi 0, %s111
    %s131 = sphi 0, %s133
    %s134 = sphi 0, %s131
    %s135 = sphi 0, %s134
    %s151 = sphi 0, %s135
  $region4: #{tpu_custom_call.1} parent=0 // loop_header_branch
    %14 = sbr.rel (%p12) target = $region8
  $region5: #{tpu_custom_call.1} parent=0 // loop_body
    %s16 = ssub.s32 %s11, 1
    %s17 = ssub.s32 %s11, 2
    %s18 = sadd.s32 %s11, 1
    %s19 = ssub.s32 %s11, %s18
    %p20 = scmp.eq.s32.totalorder %s19, 0
    %s22 = sadd.s32 %s21, 1
    %s23 = scalar_select %p20, %s21, %s22
    %p26 = pneg %p20
    %p27 = scmp.eq.s32.totalorder %s11, 3
    %p28 = por %p26, %p27
    %p29 = scmp.ne.s32.totalorder %s21, %s24
    %p30 = scmp.eq.s32.totalorder %s11, 0
    %p31 = por %p29, %p30
    %p32 = scmp.ne.s32.totalorder %s21, %s24
    %p33 = scmp.eq.s32.totalorder %s16, 3
    %p34 = por %p32, %p33
    %p35 = scmp.ne.s32.totalorder %s24, %s25
    %p36 = scmp.eq.s32.totalorder %s16, 0
    %p37 = por %p35, %p36
    %p38 = scmp.ne.s32.totalorder %s24, %s25
    %p39 = scmp.eq.s32.totalorder %s17, 3
    %p40 = por %p38, %p39
    %p42 = scmp.ne.s32.totalorder %s25, %s41
    %p43 = scmp.eq.s32.totalorder %s17, 0
    %p44 = por %p42, %p43
    %s46 = sadd.s32 %s45, 1
    %p49 = scmp.eq.s32.totalorder %s11, 3
    %p50 = scmp.ne.s32.totalorder %s45, %s47
    %p51 = scmp.eq.s32.totalorder %s11, 0
    %p52 = por %p50, %p51
    %p53 = scmp.ne.s32.totalorder %s45, %s47
    %p54 = scmp.eq.s32.totalorder %s16, 3
    %p55 = por %p53, %p54
    %p56 = scmp.ne.s32.totalorder %s47, %s48
    %p57 = scmp.eq.s32.totalorder %s16, 0
    %p58 = por %p56, %p57
    %p59 = scmp.ne.s32.totalorder %s47, %s48
    %p60 = scmp.eq.s32.totalorder %s17, 3
    %p61 = por %p59, %p60
    %p63 = scmp.ne.s32.totalorder %s48, %s62
    %p64 = scmp.eq.s32.totalorder %s17, 0
    %p65 = por %p63, %p64
    %s67 = sadd.s32 %s66, 1
    %p70 = scmp.eq.s32.totalorder %s11, 3
    %p71 = scmp.ne.s32.totalorder %s66, %s68
    %p72 = scmp.eq.s32.totalorder %s11, 0
    %p73 = por %p71, %p72
    %p74 = scmp.ne.s32.totalorder %s66, %s68
    %p75 = scmp.eq.s32.totalorder %s16, 3
    %p76 = por %p74, %p75
    %p77 = scmp.ne.s32.totalorder %s68, %s69
    %p78 = scmp.eq.s32.totalorder %s16, 0
    %p79 = por %p77, %p78
    %p80 = scmp.ne.s32.totalorder %s68, %s69
    %p81 = scmp.eq.s32.totalorder %s17, 3
    %p82 = por %p80, %p81
    %p84 = scmp.ne.s32.totalorder %s69, %s83
    %p85 = scmp.eq.s32.totalorder %s17, 0
    %p86 = por %p84, %p85
    %s88 = sadd.s32 %s87, 1
    %p91 = scmp.eq.s32.totalorder %s11, 3
    %p92 = scmp.ne.s32.totalorder %s87, %s89
    %p93 = scmp.eq.s32.totalorder %s11, 0
    %p94 = por %p92, %p93
    %p95 = scmp.ne.s32.totalorder %s87, %s89
    %p96 = scmp.eq.s32.totalorder %s16, 3
    %p97 = por %p95, %p96
    %p98 = scmp.ne.s32.totalorder %s89, %s90
    %p99 = scmp.eq.s32.totalorder %s16, 0
    %p100 = por %p98, %p99
    %p101 = scmp.ne.s32.totalorder %s89, %s90
    %p102 = scmp.eq.s32.totalorder %s17, 3
    %p103 = por %p101, %p102
    %p105 = scmp.ne.s32.totalorder %s90, %s104
    %p106 = scmp.eq.s32.totalorder %s17, 0
    %p107 = por %p105, %p106
    %s109 = sadd.s32 %s108, 1
    %p112 = scmp.eq.s32.totalorder %s11, 3
    %p113 = scmp.ne.s32.totalorder %s108, %s110
    %p114 = scmp.eq.s32.totalorder %s11, 0
    %p115 = por %p113, %p114
    %p116 = scmp.ne.s32.totalorder %s108, %s110
    %p117 = scmp.eq.s32.totalorder %s16, 3
    %p118 = por %p116, %p117
    %p119 = scmp.ne.s32.totalorder %s110, %s111
    %p120 = scmp.eq.s32.totalorder %s16, 0
    %p121 = por %p119, %p120
    %p122 = scmp.ne.s32.totalorder %s110, %s111
    %p123 = scmp.eq.s32.totalorder %s17, 3
    %p124 = por %p122, %p123
    %p126 = scmp.ne.s32.totalorder %s111, %s125
    %p127 = scmp.eq.s32.totalorder %s17, 0
    %p128 = por %p126, %p127
    %s129 = ssub.s32 %s11, %s18
    %p130 = scmp.eq.s32.totalorder %s129, 0
    %s132 = sadd.s32 %s131, 1
    %s133 = scalar_select %p130, %s131, %s132
    %p136 = pneg %p130
    %p137 = scmp.eq.s32.totalorder %s11, 3
    %p138 = por %p136, %p137
    %p139 = scmp.ne.s32.totalorder %s131, %s134
    %p140 = scmp.eq.s32.totalorder %s11, 0
    %p141 = por %p139, %p140
    %p142 = scmp.ne.s32.totalorder %s131, %s134
    %p143 = scmp.eq.s32.totalorder %s16, 3
    %p144 = por %p142, %p143
    %p145 = scmp.ne.s32.totalorder %s134, %s135
    %p146 = scmp.eq.s32.totalorder %s16, 0
    %p147 = por %p145, %p146
    %p148 = scmp.ne.s32.totalorder %s134, %s135
    %p149 = scmp.eq.s32.totalorder %s17, 3
    %p150 = por %p148, %p149
    %p152 = scmp.ne.s32.totalorder %s135, %s151
    %p153 = scmp.eq.s32.totalorder %s17, 0
    %p154 = por %p152, %p153
    %p155 = scmp.le.s32.totalorder 1, %s11
    %p156 = scmp.lt.s32.totalorder %s11, 5
    %p157 = pnand %p155, %p156
    %p158 = pneg %p157
    // Predicated region
    $region9: #{tpu_custom_call.1} parent=5 // pred_check
      _
    $region10: #{tpu_custom_call.1} parent=5 // pred_check_branch
      %160 = sbr.rel (%p157) target = $region12
    $region11: #{tpu_custom_call.1} parent=5 // pred_region
      %s161 = ssub.s32 %s11, 1
      // Predicated region
      $region13: #{tpu_custom_call.1} parent=11 // pred_check
        %p162 = pneg %p58
      $region14: #{tpu_custom_call.1} parent=11 // pred_check_branch
        %164 = sbr.rel (%p162) target = $region16
      $region15: #{tpu_custom_call.1} parent=11 // pred_region
        _
      $region16: #{tpu_custom_call.1} parent=11 // pred_fallthru
        _
      // Predicated region
      $region17: #{tpu_custom_call.1} parent=11 // pred_check
        %p165 = pneg %p79
      $region18: #{tpu_custom_call.1} parent=11 // pred_check_branch
        %167 = sbr.rel (%p165) target = $region20
      $region19: #{tpu_custom_call.1} parent=11 // pred_region
        _
      $region20: #{tpu_custom_call.1} parent=11 // pred_fallthru
        _
      // Predicated region
      $region21: #{tpu_custom_call.1} parent=11 // pred_check
        %p168 = pneg %p100
      $region22: #{tpu_custom_call.1} parent=11 // pred_check_branch
        %170 = sbr.rel (%p168) target = $region24
      $region23: #{tpu_custom_call.1} parent=11 // pred_region
        _
      $region24: #{tpu_custom_call.1} parent=11 // pred_fallthru
        _
      // Predicated region
      $region25: #{tpu_custom_call.1} parent=11 // pred_check
        %p171 = pneg %p121
      $region26: #{tpu_custom_call.1} parent=11 // pred_check_branch
        %173 = sbr.rel (%p171) target = $region28
      $region27: #{tpu_custom_call.1} parent=11 // pred_region
        _
      $region28: #{tpu_custom_call.1} parent=11 // pred_fallthru
        _
    $region12: #{tpu_custom_call.1} parent=5 // pred_fallthru
      _
    %p174 = scmp.lt.s32.totalorder %s11, 4
    // Predicated region
    $region29: #{tpu_custom_call.1} parent=5 // pred_check
      %p175 = pneg %p174
    $region30: #{tpu_custom_call.1} parent=5 // pred_check_branch
      %177 = sbr.rel (%p175) target = $region32
    $region31: #{tpu_custom_call.1} parent=5 // pred_region
      // Predicated region
      $region33: #{tpu_custom_call.1} parent=31 // pred_check
        %p178 = pneg %p31
      $region34: #{tpu_custom_call.1} parent=31 // pred_check_branch
        %180 = sbr.rel (%p178) target = $region36
      $region35: #{tpu_custom_call.1} parent=31 // pred_region
        %s181 = smul.u32 32, %s11
        %p182 = scmp.lt.s32.totalorder %s181, 127
        %s183 = scalar_select %p182, %s181, 127
        %s184 = smul.addr %s183, 7
        %s185 = smul.addr %s184, 8
        %s186 = scalar_lea.vmem %s0, %s185
        %s187 = smul.u32 32, %s11
      $region36: #{tpu_custom_call.1} parent=31 // pred_fallthru
        _
    $region32: #{tpu_custom_call.1} parent=5 // pred_fallthru
      _
    %p188 = scmp.le.s32.totalorder 1, %s11
    %p189 = scmp.lt.s32.totalorder %s11, 5
    %p190 = pnand %p188, %p189
    %p191 = pneg %p190
    // Predicated region
    $region37: #{tpu_custom_call.1} parent=5 // pred_check
      _
    $region38: #{tpu_custom_call.1} parent=5 // pred_check_branch
      %193 = sbr.rel (%p190) target = $region40
    $region39: #{tpu_custom_call.1} parent=5 // pred_region
      %s194 = ssub.s32 %s11, 1
      %s195 = smul.u32 32, %s16
      %p196 = scmp.lt.s32.totalorder %s195, 127
      %s197 = scalar_select %p196, %s195, 127
      %s198 = smul.addr %s197, 7
      %s199 = smul.addr %s198, 8
      %s200 = scalar_lea.vmem %s0, %s199
      %p201 = pneg %p37
      %p202 = pneg %p34
      %p203 = pneg %p58
      %p204 = pneg %p55
      %p205 = pneg %p79
      %p206 = pneg %p76
      %p207 = pneg %p100
      %p208 = pneg %p97
      %p209 = pneg %p121
      %p210 = pneg %p118
      %p211 = pneg %p147
      %p212 = pneg %p144
      %s213 = smul.u32 32, %s16
      %p214 = scmp.lt.s32.totalorder %s213, 127
      %s215 = scalar_select %p214, %s213, 127
      %s216 = smul.addr %s215, 8
      %s217 = scalar_lea.vmem %s5, %s216
      %s218 = smul.u32 32, %s16
      %p219 = scmp.lt.s32.totalorder %s218, 127
      %s220 = scalar_select %p219, %s218, 127
      %s221 = smul.addr %s220, 7
      %s222 = smul.addr %s221, 8
      %s223 = scalar_lea.vmem %s0, %s222
      %s224 = smul.u32 32, %s16
      %s225 = smul.u32 32, %s16
      %p226 = scmp.lt.s32.totalorder %s225, 127
      %s227 = scalar_select %p226, %s225, 127
      %s228 = smul.addr %s227, 8
      %s229 = scalar_lea.vmem %s5, %s228
      %s230 = smul.u32 32, %s16
      %v232 = vld [vmem:[%s223] sm:$0xff]
      %v233 = vld [vmem:[%s223 + $0x8] sm:$0xff]
      %v234 = vld [vmem:[%s223 + $0x10] sm:$0xff]
      %v235 = vld [vmem:[%s223 + $0x18] sm:$0xff]
      %v236 = vld [vmem:[%s223 + $0x20] sm:$0xff]
      %v237 = vld [vmem:[%s223 + $0x28] sm:$0xff]
      %v238 = vld [vmem:[%s223 + $0x30] sm:$0xff]
      %v239 = vld [vmem:[%s223 + $0x38] sm:$0xff]
      %v240 = vld [vmem:[%s223 + $0x40] sm:$0xff]
      %v241 = vld [vmem:[%s223 + $0x48] sm:$0xff]
      %v242 = vld [vmem:[%s223 + $0x50] sm:$0xff]
      %v243 = vld [vmem:[%s223 + $0x58] sm:$0xff]
      %v244 = vld [vmem:[%s223 + $0x60] sm:$0xff]
      %v245 = vld [vmem:[%s223 + $0x68] sm:$0xff]
      %v246 = vld [vmem:[%s223 + $0x70] sm:$0xff]
      %v247 = vld [vmem:[%s223 + $0x78] sm:$0xff]
      %v248 = vld [vmem:[%s223 + $0x80] sm:$0xff]
      %v249 = vld [vmem:[%s223 + $0x88] sm:$0xff]
      %v250 = vld [vmem:[%s223 + $0x90] sm:$0xff]
      %v251 = vld [vmem:[%s223 + $0x98] sm:$0xff]
      %v252 = vld [vmem:[%s223 + $0xa0] sm:$0xff]
      %v253 = vld [vmem:[%s223 + $0xa8] sm:$0xff]
      %v254 = vld [vmem:[%s223 + $0xb0] sm:$0xff]
      %v255 = vld [vmem:[%s223 + $0xb8] sm:$0xff]
      %v256 = vld [vmem:[%s223 + $0xc0] sm:$0xff]
      %v257 = vld [vmem:[%s223 + $0xc8] sm:$0xff]
      %v258 = vld [vmem:[%s223 + $0xd0] sm:$0xff]
      %v259 = vld [vmem:[%s223 + $0xd8] sm:$0xff]
      %v260 = vld [vmem:[%s223 + $0xe0] sm:$0xff]
      %v261 = vld [vmem:[%s223 + $0xe8] sm:$0xff]
      %v262 = vld [vmem:[%s223 + $0xf0] sm:$0xff]
      %v263 = vld [vmem:[%s223 + $0xf8] sm:$0xff]
      %v264 = vld [vmem:[%s223 + $0x100] sm:$0xff]
      %v265 = vld [vmem:[%s223 + $0x108] sm:$0xff]
      %v266 = vld [vmem:[%s223 + $0x110] sm:$0xff]
      %v267 = vld [vmem:[%s223 + $0x118] sm:$0xff]
      %v268 = vld [vmem:[%s223 + $0x120] sm:$0xff]
      %v269 = vld [vmem:[%s223 + $0x128] sm:$0xff]
      %v270 = vld [vmem:[%s223 + $0x130] sm:$0xff]
      %v271 = vld [vmem:[%s223 + $0x138] sm:$0xff]
      %v272 = vld [vmem:[%s223 + $0x140] sm:$0xff]
      %v273 = vld [vmem:[%s223 + $0x148] sm:$0xff]
      %v274 = vld [vmem:[%s223 + $0x150] sm:$0xff]
      %v275 = vld [vmem:[%s223 + $0x158] sm:$0xff]
      %v276 = vld [vmem:[%s223 + $0x160] sm:$0xff]
      %v277 = vld [vmem:[%s223 + $0x168] sm:$0xff]
      %v278 = vld [vmem:[%s223 + $0x170] sm:$0xff]
      %v279 = vld [vmem:[%s223 + $0x178] sm:$0xff]
      %v280 = vld [vmem:[%s223 + $0x180] sm:$0xff]
      %v281 = vld [vmem:[%s223 + $0x188] sm:$0xff]
      %v282 = vld [vmem:[%s223 + $0x190] sm:$0xff]
      %v283 = vld [vmem:[%s223 + $0x198] sm:$0xff]
      %v284 = vld [vmem:[%s223 + $0x1a0] sm:$0xff]
      %v285 = vld [vmem:[%s223 + $0x1a8] sm:$0xff]
      %v286 = vld [vmem:[%s223 + $0x1b0] sm:$0xff]
      %v287 = vld [vmem:[%s223 + $0x1b8] sm:$0xff]
      %v288 = vld [vmem:[%s223 + $0x1c0] sm:$0xff]
      %v289 = vld [vmem:[%s223 + $0x1c8] sm:$0xff]
      %v290 = vld [vmem:[%s223 + $0x1d0] sm:$0xff]
      %v291 = vld [vmem:[%s223 + $0x1d8] sm:$0xff]
      %v292 = vld [vmem:[%s223 + $0x1e0] sm:$0xff]
      %v293 = vld [vmem:[%s223 + $0x1e8] sm:$0xff]
      %v294 = vld [vmem:[%s223 + $0x1f0] sm:$0xff]
      %v295 = vld [vmem:[%s223 + $0x1f8] sm:$0xff]
      %v296 = vld [vmem:[%s223 + $0x200] sm:$0xff]
      %v297 = vld [vmem:[%s223 + $0x208] sm:$0xff]
      %v298 = vld [vmem:[%s223 + $0x210] sm:$0xff]
      %v299 = vld [vmem:[%s223 + $0x218] sm:$0xff]
      %v300 = vld [vmem:[%s223 + $0x220] sm:$0xff]
      %v301 = vld [vmem:[%s223 + $0x228] sm:$0xff]
      %v302 = vld [vmem:[%s223 + $0x230] sm:$0xff]
      %v303 = vld [vmem:[%s223 + $0x238] sm:$0xff]
      %v304 = vld [vmem:[%s223 + $0x240] sm:$0xff]
      %v305 = vld [vmem:[%s223 + $0x248] sm:$0xff]
      %v306 = vld [vmem:[%s223 + $0x250] sm:$0xff]
      %v307 = vld [vmem:[%s223 + $0x258] sm:$0xff]
      %v308 = vld [vmem:[%s223 + $0x260] sm:$0xff]
      %v309 = vld [vmem:[%s223 + $0x268] sm:$0xff]
      %v310 = vld [vmem:[%s223 + $0x270] sm:$0xff]
      %v311 = vld [vmem:[%s223 + $0x278] sm:$0xff]
      %v312 = vld [vmem:[%s223 + $0x280] sm:$0xff]
      %v313 = vld [vmem:[%s223 + $0x288] sm:$0xff]
      %v314 = vld [vmem:[%s223 + $0x290] sm:$0xff]
      %v315 = vld [vmem:[%s223 + $0x298] sm:$0xff]
      %v316 = vld [vmem:[%s223 + $0x2a0] sm:$0xff]
      %v317 = vld [vmem:[%s223 + $0x2a8] sm:$0xff]
      %v318 = vld [vmem:[%s223 + $0x2b0] sm:$0xff]
      %v319 = vld [vmem:[%s223 + $0x2b8] sm:$0xff]
      %v320 = vld [vmem:[%s223 + $0x2c0] sm:$0xff]
      %v321 = vld [vmem:[%s223 + $0x2c8] sm:$0xff]
      %v322 = vld [vmem:[%s223 + $0x2d0] sm:$0xff]
      %v323 = vld [vmem:[%s223 + $0x2d8] sm:$0xff]
      %v324 = vld [vmem:[%s223 + $0x2e0] sm:$0xff]
      %v325 = vld [vmem:[%s223 + $0x2e8] sm:$0xff]
      %v326 = vld [vmem:[%s223 + $0x2f0] sm:$0xff]
      %v327 = vld [vmem:[%s223 + $0x2f8] sm:$0xff]
      %v328 = vld [vmem:[%s223 + $0x300] sm:$0xff]
      %v329 = vld [vmem:[%s223 + $0x308] sm:$0xff]
      %v330 = vld [vmem:[%s223 + $0x310] sm:$0xff]
      %v331 = vld [vmem:[%s223 + $0x318] sm:$0xff]
      %v332 = vld [vmem:[%s223 + $0x320] sm:$0xff]
      %v333 = vld [vmem:[%s223 + $0x328] sm:$0xff]
      %v334 = vld [vmem:[%s223 + $0x330] sm:$0xff]
      %v335 = vld [vmem:[%s223 + $0x338] sm:$0xff]
      %v336 = vld [vmem:[%s223 + $0x340] sm:$0xff]
      %v337 = vld [vmem:[%s223 + $0x348] sm:$0xff]
      %v338 = vld [vmem:[%s223 + $0x350] sm:$0xff]
      %v339 = vld [vmem:[%s223 + $0x358] sm:$0xff]
      %v340 = vld [vmem:[%s223 + $0x360] sm:$0xff]
      %v341 = vld [vmem:[%s223 + $0x368] sm:$0xff]
      %v342 = vld [vmem:[%s223 + $0x370] sm:$0xff]
      %v343 = vld [vmem:[%s223 + $0x378] sm:$0xff]
      %v344 = vld [vmem:[%s223 + $0x380] sm:$0xff]
      %v345 = vld [vmem:[%s223 + $0x388] sm:$0xff]
      %v346 = vld [vmem:[%s223 + $0x390] sm:$0xff]
      %v347 = vld [vmem:[%s223 + $0x398] sm:$0xff]
      %v348 = vld [vmem:[%s223 + $0x3a0] sm:$0xff]
      %v349 = vld [vmem:[%s223 + $0x3a8] sm:$0xff]
      %v350 = vld [vmem:[%s223 + $0x3b0] sm:$0xff]
      %v351 = vld [vmem:[%s223 + $0x3b8] sm:$0xff]
      %v352 = vld [vmem:[%s223 + $0x3c0] sm:$0xff]
      %v353 = vld [vmem:[%s223 + $0x3c8] sm:$0xff]
      %v354 = vld [vmem:[%s223 + $0x3d0] sm:$0xff]
      %v355 = vld [vmem:[%s223 + $0x3d8] sm:$0xff]
      %v356 = vld [vmem:[%s223 + $0x3e0] sm:$0xff]
      %v357 = vld [vmem:[%s223 + $0x3e8] sm:$0xff]
      %v358 = vld [vmem:[%s223 + $0x3f0] sm:$0xff]
      %v359 = vld [vmem:[%s223 + $0x3f8] sm:$0xff]
      %v360 = vld [vmem:[%s223 + $0x400] sm:$0xff]
      %v361 = vld [vmem:[%s223 + $0x408] sm:$0xff]
      %v362 = vld [vmem:[%s223 + $0x410] sm:$0xff]
      %v363 = vld [vmem:[%s223 + $0x418] sm:$0xff]
      %v364 = vld [vmem:[%s223 + $0x420] sm:$0xff]
      %v365 = vld [vmem:[%s223 + $0x428] sm:$0xff]
      %v366 = vld [vmem:[%s223 + $0x430] sm:$0xff]
      %v367 = vld [vmem:[%s223 + $0x438] sm:$0xff]
      %v368 = vld [vmem:[%s223 + $0x440] sm:$0xff]
      %v369 = vld [vmem:[%s223 + $0x448] sm:$0xff]
      %v370 = vld [vmem:[%s223 + $0x450] sm:$0xff]
      %v371 = vld [vmem:[%s223 + $0x458] sm:$0xff]
      %v372 = vld [vmem:[%s223 + $0x460] sm:$0xff]
      %v373 = vld [vmem:[%s223 + $0x468] sm:$0xff]
      %v374 = vld [vmem:[%s223 + $0x470] sm:$0xff]
      %v375 = vld [vmem:[%s223 + $0x478] sm:$0xff]
      %v376 = vld [vmem:[%s223 + $0x480] sm:$0xff]
      %v377 = vld [vmem:[%s223 + $0x488] sm:$0xff]
      %v378 = vld [vmem:[%s223 + $0x490] sm:$0xff]
      %v379 = vld [vmem:[%s223 + $0x498] sm:$0xff]
      %v380 = vld [vmem:[%s223 + $0x4a0] sm:$0xff]
      %v381 = vld [vmem:[%s223 + $0x4a8] sm:$0xff]
      %v382 = vld [vmem:[%s223 + $0x4b0] sm:$0xff]
      %v383 = vld [vmem:[%s223 + $0x4b8] sm:$0xff]
      %v384 = vld [vmem:[%s223 + $0x4c0] sm:$0xff]
      %v385 = vld [vmem:[%s223 + $0x4c8] sm:$0xff]
      %v386 = vld [vmem:[%s223 + $0x4d0] sm:$0xff]
      %v387 = vld [vmem:[%s223 + $0x4d8] sm:$0xff]
      %v388 = vld [vmem:[%s223 + $0x4e0] sm:$0xff]
      %v389 = vld [vmem:[%s223 + $0x4e8] sm:$0xff]
      %v390 = vld [vmem:[%s223 + $0x4f0] sm:$0xff]
      %v391 = vld [vmem:[%s223 + $0x4f8] sm:$0xff]
      %v392 = vld [vmem:[%s223 + $0x500] sm:$0xff]
      %v393 = vld [vmem:[%s223 + $0x508] sm:$0xff]
      %v394 = vld [vmem:[%s223 + $0x510] sm:$0xff]
      %v395 = vld [vmem:[%s223 + $0x518] sm:$0xff]
      %v396 = vld [vmem:[%s223 + $0x520] sm:$0xff]
      %v397 = vld [vmem:[%s223 + $0x528] sm:$0xff]
      %v398 = vld [vmem:[%s223 + $0x530] sm:$0xff]
      %v399 = vld [vmem:[%s223 + $0x538] sm:$0xff]
      %v400 = vld [vmem:[%s223 + $0x540] sm:$0xff]
      %v401 = vld [vmem:[%s223 + $0x548] sm:$0xff]
      %v402 = vld [vmem:[%s223 + $0x550] sm:$0xff]
      %v403 = vld [vmem:[%s223 + $0x558] sm:$0xff]
      %v404 = vld [vmem:[%s223 + $0x560] sm:$0xff]
      %v405 = vld [vmem:[%s223 + $0x568] sm:$0xff]
      %v406 = vld [vmem:[%s223 + $0x570] sm:$0xff]
      %v407 = vld [vmem:[%s223 + $0x578] sm:$0xff]
      %v408 = vld [vmem:[%s223 + $0x580] sm:$0xff]
      %v409 = vld [vmem:[%s223 + $0x588] sm:$0xff]
      %v410 = vld [vmem:[%s223 + $0x590] sm:$0xff]
      %v411 = vld [vmem:[%s223 + $0x598] sm:$0xff]
      %v412 = vld [vmem:[%s223 + $0x5a0] sm:$0xff]
      %v413 = vld [vmem:[%s223 + $0x5a8] sm:$0xff]
      %v414 = vld [vmem:[%s223 + $0x5b0] sm:$0xff]
      %v415 = vld [vmem:[%s223 + $0x5b8] sm:$0xff]
      %v416 = vld [vmem:[%s223 + $0x5c0] sm:$0xff]
      %v417 = vld [vmem:[%s223 + $0x5c8] sm:$0xff]
      %v418 = vld [vmem:[%s223 + $0x5d0] sm:$0xff]
      %v419 = vld [vmem:[%s223 + $0x5d8] sm:$0xff]
      %v420 = vld [vmem:[%s223 + $0x5e0] sm:$0xff]
      %v421 = vld [vmem:[%s223 + $0x5e8] sm:$0xff]
      %v422 = vld [vmem:[%s223 + $0x5f0] sm:$0xff]
      %v423 = vld [vmem:[%s223 + $0x5f8] sm:$0xff]
      %v424 = vld [vmem:[%s223 + $0x600] sm:$0xff]
      %v425 = vld [vmem:[%s223 + $0x608] sm:$0xff]
      %v426 = vld [vmem:[%s223 + $0x610] sm:$0xff]
      %v427 = vld [vmem:[%s223 + $0x618] sm:$0xff]
      %v428 = vld [vmem:[%s223 + $0x620] sm:$0xff]
      %v429 = vld [vmem:[%s223 + $0x628] sm:$0xff]
      %v430 = vld [vmem:[%s223 + $0x630] sm:$0xff]
      %v431 = vld [vmem:[%s223 + $0x638] sm:$0xff]
      %v432 = vld [vmem:[%s223 + $0x640] sm:$0xff]
      %v433 = vld [vmem:[%s223 + $0x648] sm:$0xff]
      %v434 = vld [vmem:[%s223 + $0x650] sm:$0xff]
      %v435 = vld [vmem:[%s223 + $0x658] sm:$0xff]
      %v436 = vld [vmem:[%s223 + $0x660] sm:$0xff]
      %v437 = vld [vmem:[%s223 + $0x668] sm:$0xff]
      %v438 = vld [vmem:[%s223 + $0x670] sm:$0xff]
      %v439 = vld [vmem:[%s223 + $0x678] sm:$0xff]
      %v440 = vld [vmem:[%s223 + $0x680] sm:$0xff]
      %v441 = vld [vmem:[%s223 + $0x688] sm:$0xff]
      %v442 = vld [vmem:[%s223 + $0x690] sm:$0xff]
      %v443 = vld [vmem:[%s223 + $0x698] sm:$0xff]
      %v444 = vld [vmem:[%s223 + $0x6a0] sm:$0xff]
      %v445 = vld [vmem:[%s223 + $0x6a8] sm:$0xff]
      %v446 = vld [vmem:[%s223 + $0x6b0] sm:$0xff]
      %v447 = vld [vmem:[%s223 + $0x6b8] sm:$0xff]
      %v448 = vld [vmem:[%s223 + $0x6c0] sm:$0xff]
      %v449 = vld [vmem:[%s223 + $0x6c8] sm:$0xff]
      %v450 = vld [vmem:[%s223 + $0x6d0] sm:$0xff]
      %v451 = vld [vmem:[%s223 + $0x6d8] sm:$0xff]
      %v452 = vld [vmem:[%s223 + $0x6e0] sm:$0xff]
      %v453 = vld [vmem:[%s223 + $0x6e8] sm:$0xff]
      %v454 = vld [vmem:[%s223 + $0x6f0] sm:$0xff]
      %v455 = vld [vmem:[%s223 + $0x6f8] sm:$0xff]
      %v456 = vpack.c.bf16 %v239, %v232
      %v457 = vpack.c.bf16 %v240, %v233
      %v458 = vpack.c.bf16 %v241, %v234
      %v459 = vpack.c.bf16 %v242, %v235
      %v460 = vpack.c.bf16 %v243, %v236
      %v461 = vpack.c.bf16 %v244, %v237
      %v462 = vpack.c.bf16 %v245, %v238
      %v463 = vpack.c.bf16 %v253, %v246
      %v464 = vpack.c.bf16 %v254, %v247
      %v465 = vpack.c.bf16 %v255, %v248
      %v466 = vpack.c.bf16 %v256, %v249
      %v467 = vpack.c.bf16 %v257, %v250
      %v468 = vpack.c.bf16 %v258, %v251
      %v469 = vpack.c.bf16 %v259, %v252
      %v470 = vpack.c.bf16 %v267, %v260
      %v471 = vpack.c.bf16 %v268, %v261
      %v472 = vpack.c.bf16 %v269, %v262
      %v473 = vpack.c.bf16 %v270, %v263
      %v474 = vpack.c.bf16 %v271, %v264
      %v475 = vpack.c.bf16 %v272, %v265
      %v476 = vpack.c.bf16 %v273, %v266
      %v477 = vpack.c.bf16 %v281, %v274
      %v478 = vpack.c.bf16 %v282, %v275
      %v479 = vpack.c.bf16 %v283, %v276
      %v480 = vpack.c.bf16 %v284, %v277
      %v481 = vpack.c.bf16 %v285, %v278
      %v482 = vpack.c.bf16 %v286, %v279
      %v483 = vpack.c.bf16 %v287, %v280
      %v484 = vpack.c.bf16 %v295, %v288
      %v485 = vpack.c.bf16 %v296, %v289
      %v486 = vpack.c.bf16 %v297, %v290
      %v487 = vpack.c.bf16 %v298, %v291
      %v488 = vpack.c.bf16 %v299, %v292
      %v489 = vpack.c.bf16 %v300, %v293
      %v490 = vpack.c.bf16 %v301, %v294
      %v491 = vpack.c.bf16 %v309, %v302
      %v492 = vpack.c.bf16 %v310, %v303
      %v493 = vpack.c.bf16 %v311, %v304
      %v494 = vpack.c.bf16 %v312, %v305
      %v495 = vpack.c.bf16 %v313, %v306
      %v496 = vpack.c.bf16 %v314, %v307
      %v497 = vpack.c.bf16 %v315, %v308
      %v498 = vpack.c.bf16 %v323, %v316
      %v499 = vpack.c.bf16 %v324, %v317
      %v500 = vpack.c.bf16 %v325, %v318
      %v501 = vpack.c.bf16 %v326, %v319
      %v502 = vpack.c.bf16 %v327, %v320
      %v503 = vpack.c.bf16 %v328, %v321
      %v504 = vpack.c.bf16 %v329, %v322
      %v505 = vpack.c.bf16 %v337, %v330
      %v506 = vpack.c.bf16 %v338, %v331
      %v507 = vpack.c.bf16 %v339, %v332
      %v508 = vpack.c.bf16 %v340, %v333
      %v509 = vpack.c.bf16 %v341, %v334
      %v510 = vpack.c.bf16 %v342, %v335
      %v511 = vpack.c.bf16 %v343, %v336
      %v512 = vpack.c.bf16 %v351, %v344
      %v513 = vpack.c.bf16 %v352, %v345
      %v514 = vpack.c.bf16 %v353, %v346
      %v515 = vpack.c.bf16 %v354, %v347
      %v516 = vpack.c.bf16 %v355, %v348
      %v517 = vpack.c.bf16 %v356, %v349
      %v518 = vpack.c.bf16 %v357, %v350
      %v519 = vpack.c.bf16 %v365, %v358
      %v520 = vpack.c.bf16 %v366, %v359
      %v521 = vpack.c.bf16 %v367, %v360
      %v522 = vpack.c.bf16 %v368, %v361
      %v523 = vpack.c.bf16 %v369, %v362
      %v524 = vpack.c.bf16 %v370, %v363
      %v525 = vpack.c.bf16 %v371, %v364
      %v526 = vpack.c.bf16 %v379, %v372
      %v527 = vpack.c.bf16 %v380, %v373
      %v528 = vpack.c.bf16 %v381, %v374
      %v529 = vpack.c.bf16 %v382, %v375
      %v530 = vpack.c.bf16 %v383, %v376
      %v531 = vpack.c.bf16 %v384, %v377
      %v532 = vpack.c.bf16 %v385, %v378
      %v533 = vpack.c.bf16 %v393, %v386
      %v534 = vpack.c.bf16 %v394, %v387
      %v535 = vpack.c.bf16 %v395, %v388
      %v536 = vpack.c.bf16 %v396, %v389
      %v537 = vpack.c.bf16 %v397, %v390
      %v538 = vpack.c.bf16 %v398, %v391
      %v539 = vpack.c.bf16 %v399, %v392
      %v540 = vpack.c.bf16 %v407, %v400
      %v541 = vpack.c.bf16 %v408, %v401
      %v542 = vpack.c.bf16 %v409, %v402
      %v543 = vpack.c.bf16 %v410, %v403
      %v544 = vpack.c.bf16 %v411, %v404
      %v545 = vpack.c.bf16 %v412, %v405
      %v546 = vpack.c.bf16 %v413, %v406
      %v547 = vpack.c.bf16 %v421, %v414
      %v548 = vpack.c.bf16 %v422, %v415
      %v549 = vpack.c.bf16 %v423, %v416
      %v550 = vpack.c.bf16 %v424, %v417
      %v551 = vpack.c.bf16 %v425, %v418
      %v552 = vpack.c.bf16 %v426, %v419
      %v553 = vpack.c.bf16 %v427, %v420
      %v554 = vpack.c.bf16 %v435, %v428
      %v555 = vpack.c.bf16 %v436, %v429
      %v556 = vpack.c.bf16 %v437, %v430
      %v557 = vpack.c.bf16 %v438, %v431
      %v558 = vpack.c.bf16 %v439, %v432
      %v559 = vpack.c.bf16 %v440, %v433
      %v560 = vpack.c.bf16 %v441, %v434
      %v561 = vpack.c.bf16 %v449, %v442
      %v562 = vpack.c.bf16 %v450, %v443
      %v563 = vpack.c.bf16 %v451, %v444
      %v564 = vpack.c.bf16 %v452, %v445
      %v565 = vpack.c.bf16 %v453, %v446
      %v566 = vpack.c.bf16 %v454, %v447
      %v567 = vpack.c.bf16 %v455, %v448
      %v568 = vld [vmem:[%s1] sm:$0xff]
      %v569 = vld [vmem:[%s1 + $0x8] sm:$0xff]
      %v570 = vld [vmem:[%s1 + $0x10] sm:$0xff]
      %v571 = vld [vmem:[%s1 + $0x18] sm:$0xff]
      %v572 = vld [vmem:[%s1 + $0x20] sm:$0xff]
      %v573 = vld [vmem:[%s1 + $0x28] sm:$0xff]
      %v574 = vld [vmem:[%s1 + $0x30] sm:$0xff]
      %v575 = vld [vmem:[%s1 + $0x38] sm:$0xff]
      %v576 = vld [vmem:[%s1 + $0x40] sm:$0xff]
      %v577 = vld [vmem:[%s1 + $0x48] sm:$0xff]
      %v578 = vld [vmem:[%s1 + $0x50] sm:$0xff]
      %v579 = vld [vmem:[%s1 + $0x58] sm:$0xff]
      %v580 = vld [vmem:[%s1 + $0x60] sm:$0xff]
      %v581 = vld [vmem:[%s1 + $0x68] sm:$0xff]
      %v582 = vld [vmem:[%s1 + $0x70] sm:$0xff]
      %v583 = vld [vmem:[%s1 + $0x78] sm:$0xff]
      %v584 = vld [vmem:[%s1 + $0x80] sm:$0xff]
      %v585 = vld [vmem:[%s1 + $0x88] sm:$0xff]
      %v586 = vld [vmem:[%s1 + $0x90] sm:$0xff]
      %v587 = vld [vmem:[%s1 + $0x98] sm:$0xff]
      %v588 = vld [vmem:[%s1 + $0xa0] sm:$0xff]
      %v589 = vld [vmem:[%s1 + $0xa8] sm:$0xff]
      %v590 = vld [vmem:[%s1 + $0xb0] sm:$0xff]
      %v591 = vld [vmem:[%s1 + $0xb8] sm:$0xff]
      %v592 = vld [vmem:[%s1 + $0xc0] sm:$0xff]
      %v593 = vld [vmem:[%s1 + $0xc8] sm:$0xff]
      %v594 = vld [vmem:[%s1 + $0xd0] sm:$0xff]
      %v595 = vld [vmem:[%s1 + $0xd8] sm:$0xff]
      %v596 = vld [vmem:[%s1 + $0xe0] sm:$0xff]
      %v597 = vld [vmem:[%s1 + $0xe8] sm:$0xff]
      %v598 = vld [vmem:[%s1 + $0xf0] sm:$0xff]
      %v599 = vld [vmem:[%s1 + $0xf8] sm:$0xff]
      %v600 = vld [vmem:[%s1 + $0x100] sm:$0xff]
      %v601 = vld [vmem:[%s1 + $0x108] sm:$0xff]
      %v602 = vld [vmem:[%s1 + $0x110] sm:$0xff]
      %v603 = vld [vmem:[%s1 + $0x118] sm:$0xff]
      %v604 = vld [vmem:[%s1 + $0x120] sm:$0xff]
      %v605 = vld [vmem:[%s1 + $0x128] sm:$0xff]
      %v606 = vld [vmem:[%s1 + $0x130] sm:$0xff]
      %v607 = vld [vmem:[%s1 + $0x138] sm:$0xff]
      %v608 = vld [vmem:[%s1 + $0x140] sm:$0xff]
      %v609 = vld [vmem:[%s1 + $0x148] sm:$0xff]
      %v610 = vld [vmem:[%s1 + $0x150] sm:$0xff]
      %v611 = vld [vmem:[%s1 + $0x158] sm:$0xff]
      %v612 = vld [vmem:[%s1 + $0x160] sm:$0xff]
      %v613 = vld [vmem:[%s1 + $0x168] sm:$0xff]
      %v614 = vld [vmem:[%s1 + $0x170] sm:$0xff]
      %v615 = vld [vmem:[%s1 + $0x178] sm:$0xff]
      %v616 = vld [vmem:[%s1 + $0x180] sm:$0xff]
      %v617 = vld [vmem:[%s1 + $0x188] sm:$0xff]
      %v618 = vld [vmem:[%s1 + $0x190] sm:$0xff]
      %v619 = vld [vmem:[%s1 + $0x198] sm:$0xff]
      %v620 = vld [vmem:[%s1 + $0x1a0] sm:$0xff]
      %v621 = vld [vmem:[%s1 + $0x1a8] sm:$0xff]
      %v622 = vld [vmem:[%s1 + $0x1b0] sm:$0xff]
      %v623 = vld [vmem:[%s1 + $0x1b8] sm:$0xff]
      %v624 = vld [vmem:[%s1 + $0x1c0] sm:$0xff]
      %v625 = vld [vmem:[%s1 + $0x1c8] sm:$0xff]
      %v626 = vld [vmem:[%s1 + $0x1d0] sm:$0xff]
      %v627 = vld [vmem:[%s1 + $0x1d8] sm:$0xff]
      %v628 = vld [vmem:[%s1 + $0x1e0] sm:$0xff]
      %v629 = vld [vmem:[%s1 + $0x1e8] sm:$0xff]
      %v630 = vld [vmem:[%s1 + $0x1f0] sm:$0xff]
      %v631 = vld [vmem:[%s1 + $0x1f8] sm:$0xff]
      %v632 = vld [vmem:[%s1 + $0x200] sm:$0xff]
      %v633 = vld [vmem:[%s1 + $0x208] sm:$0xff]
      %v634 = vld [vmem:[%s1 + $0x210] sm:$0xff]
      %v635 = vld [vmem:[%s1 + $0x218] sm:$0xff]
      %v636 = vld [vmem:[%s1 + $0x220] sm:$0xff]
      %v637 = vld [vmem:[%s1 + $0x228] sm:$0xff]
      %v638 = vld [vmem:[%s1 + $0x230] sm:$0xff]
      %v639 = vld [vmem:[%s1 + $0x238] sm:$0xff]
      %v640 = vld [vmem:[%s1 + $0x240] sm:$0xff]
      %v641 = vld [vmem:[%s1 + $0x248] sm:$0xff]
      %v642 = vld [vmem:[%s1 + $0x250] sm:$0xff]
      %v643 = vld [vmem:[%s1 + $0x258] sm:$0xff]
      %v644 = vld [vmem:[%s1 + $0x260] sm:$0xff]
      %v645 = vld [vmem:[%s1 + $0x268] sm:$0xff]
      %v646 = vld [vmem:[%s1 + $0x270] sm:$0xff]
      %v647 = vld [vmem:[%s1 + $0x278] sm:$0xff]
      %v648 = vld [vmem:[%s1 + $0x280] sm:$0xff]
      %v649 = vld [vmem:[%s1 + $0x288] sm:$0xff]
      %v650 = vld [vmem:[%s1 + $0x290] sm:$0xff]
      %v651 = vld [vmem:[%s1 + $0x298] sm:$0xff]
      %v652 = vld [vmem:[%s1 + $0x2a0] sm:$0xff]
      %v653 = vld [vmem:[%s1 + $0x2a8] sm:$0xff]
      %v654 = vld [vmem:[%s1 + $0x2b0] sm:$0xff]
      %v655 = vld [vmem:[%s1 + $0x2b8] sm:$0xff]
      %v656 = vld [vmem:[%s1 + $0x2c0] sm:$0xff]
      %v657 = vld [vmem:[%s1 + $0x2c8] sm:$0xff]
      %v658 = vld [vmem:[%s1 + $0x2d0] sm:$0xff]
      %v659 = vld [vmem:[%s1 + $0x2d8] sm:$0xff]
      %v660 = vld [vmem:[%s1 + $0x2e0] sm:$0xff]
      %v661 = vld [vmem:[%s1 + $0x2e8] sm:$0xff]
      %v662 = vld [vmem:[%s1 + $0x2f0] sm:$0xff]
      %v663 = vld [vmem:[%s1 + $0x2f8] sm:$0xff]
      %v664 = vld [vmem:[%s1 + $0x300] sm:$0xff]
      %v665 = vld [vmem:[%s1 + $0x308] sm:$0xff]
      %v666 = vld [vmem:[%s2] sm:$0x3]
      %v668 = vlaneseq
      %v669 = vshrl.u32 %v668, 7
      %v670 = vsub.s32 0, %v669
      %v671 = vrot.slane %v666, %v670
      %v672 = vlaneseq
      %v673 = vshrl.u32 %v672, 7
      %v674 = vsub.s32 1, %v673
      %v675 = vrot.slane %v666, %v674
      %v776 = vunpack.c.l.b16 %v568
      %v777 = vunpack.c.h.b16 %v568
      %v778 = vunpack.c.l.b16 %v569
      %v779 = vunpack.c.h.b16 %v569
      %v780 = vunpack.c.l.b16 %v570
      %v781 = vunpack.c.h.b16 %v570
      %v782 = vunpack.c.l.b16 %v571
      %v783 = vunpack.c.h.b16 %v571
      %v784 = vunpack.c.l.b16 %v572
      %v785 = vunpack.c.h.b16 %v572
      %v786 = vunpack.c.l.b16 %v573
      %v787 = vunpack.c.h.b16 %v573
      %v788 = vunpack.c.l.b16 %v574
      %v789 = vunpack.c.h.b16 %v574
      %v790 = vunpack.c.l.b16 %v575
      %v791 = vunpack.c.h.b16 %v575
      %v792 = vunpack.c.l.b16 %v576
      %v793 = vunpack.c.h.b16 %v576
      %v794 = vunpack.c.l.b16 %v577
      %v795 = vunpack.c.h.b16 %v577
      %v796 = vunpack.c.l.b16 %v578
      %v797 = vunpack.c.h.b16 %v578
      %v798 = vunpack.c.l.b16 %v579
      %v799 = vunpack.c.h.b16 %v579
      %v800 = vunpack.c.l.b16 %v580
      %v801 = vunpack.c.h.b16 %v580
      %v802 = vunpack.c.l.b16 %v581
      %v803 = vunpack.c.h.b16 %v581
      %v804 = vunpack.c.l.b16 %v582
      %v805 = vunpack.c.h.b16 %v582
      %v806 = vunpack.c.l.b16 %v583
      %v807 = vunpack.c.h.b16 %v583
      %v808 = vunpack.c.l.b16 %v584
      %v809 = vunpack.c.h.b16 %v584
      %v810 = vunpack.c.l.b16 %v585
      %v811 = vunpack.c.h.b16 %v585
      %v812 = vunpack.c.l.b16 %v586
      %v813 = vunpack.c.h.b16 %v586
      %v814 = vunpack.c.l.b16 %v587
      %v815 = vunpack.c.h.b16 %v587
      %v816 = vunpack.c.l.b16 %v588
      %v817 = vunpack.c.h.b16 %v588
      %v818 = vunpack.c.l.b16 %v589
      %v819 = vunpack.c.h.b16 %v589
      %v820 = vunpack.c.l.b16 %v590
      %v821 = vunpack.c.h.b16 %v590
      %v822 = vunpack.c.l.b16 %v591
      %v823 = vunpack.c.h.b16 %v591
      %v824 = vunpack.c.l.b16 %v592
      %v825 = vunpack.c.h.b16 %v592
      %v826 = vunpack.c.l.b16 %v593
      %v827 = vunpack.c.h.b16 %v593
      %v828 = vunpack.c.l.b16 %v594
      %v829 = vunpack.c.h.b16 %v594
      %v830 = vunpack.c.l.b16 %v595
      %v831 = vunpack.c.h.b16 %v595
      %v832 = vunpack.c.l.b16 %v596
      %v833 = vunpack.c.h.b16 %v596
      %v834 = vunpack.c.l.b16 %v597
      %v835 = vunpack.c.h.b16 %v597
      %v836 = vunpack.c.l.b16 %v598
      %v837 = vunpack.c.h.b16 %v598
      %v838 = vunpack.c.l.b16 %v599
      %v839 = vunpack.c.h.b16 %v599
      %v840 = vunpack.c.l.b16 %v600
      %v841 = vunpack.c.h.b16 %v600
      %v842 = vunpack.c.l.b16 %v601
      %v843 = vunpack.c.h.b16 %v601
      %v844 = vunpack.c.l.b16 %v602
      %v845 = vunpack.c.h.b16 %v602
      %v846 = vunpack.c.l.b16 %v603
      %v847 = vunpack.c.h.b16 %v603
      %v848 = vunpack.c.l.b16 %v604
      %v849 = vunpack.c.h.b16 %v604
      %v850 = vunpack.c.l.b16 %v605
      %v851 = vunpack.c.h.b16 %v605
      %v852 = vunpack.c.l.b16 %v606
      %v853 = vunpack.c.h.b16 %v606
      %v854 = vunpack.c.l.b16 %v607
      %v855 = vunpack.c.h.b16 %v607
      %v856 = vunpack.c.l.b16 %v608
      %v857 = vunpack.c.h.b16 %v608
      %v858 = vunpack.c.l.b16 %v609
      %v859 = vunpack.c.h.b16 %v609
      %v860 = vunpack.c.l.b16 %v610
      %v861 = vunpack.c.h.b16 %v610
      %v862 = vunpack.c.l.b16 %v611
      %v863 = vunpack.c.h.b16 %v611
      %v864 = vunpack.c.l.b16 %v612
      %v865 = vunpack.c.h.b16 %v612
      %v866 = vunpack.c.l.b16 %v613
      %v867 = vunpack.c.h.b16 %v613
      %v868 = vunpack.c.l.b16 %v614
      %v869 = vunpack.c.h.b16 %v614
      %v870 = vunpack.c.l.b16 %v615
      %v871 = vunpack.c.h.b16 %v615
      %v872 = vunpack.c.l.b16 %v616
      %v873 = vunpack.c.h.b16 %v616
      %v874 = vunpack.c.l.b16 %v617
      %v875 = vunpack.c.h.b16 %v617
      %v876 = vunpack.c.l.b16 %v618
      %v877 = vunpack.c.h.b16 %v618
      %v878 = vunpack.c.l.b16 %v619
      %v879 = vunpack.c.h.b16 %v619
      %v880 = vunpack.c.l.b16 %v620
      %v881 = vunpack.c.h.b16 %v620
      %v882 = vunpack.c.l.b16 %v621
      %v883 = vunpack.c.h.b16 %v621
      %v884 = vunpack.c.l.b16 %v622
      %v885 = vunpack.c.h.b16 %v622
      %v886 = vunpack.c.l.b16 %v623
      %v887 = vunpack.c.h.b16 %v623
      %v888 = vunpack.c.l.b16 %v624
      %v889 = vunpack.c.h.b16 %v624
      %v890 = vunpack.c.l.b16 %v625
      %v891 = vunpack.c.h.b16 %v625
      %v892 = vunpack.c.l.b16 %v626
      %v893 = vunpack.c.h.b16 %v626
      %v894 = vunpack.c.l.b16 %v627
      %v895 = vunpack.c.h.b16 %v627
      %v896 = vunpack.c.l.b16 %v628
      %v897 = vunpack.c.h.b16 %v628
      %v898 = vunpack.c.l.b16 %v629
      %v899 = vunpack.c.h.b16 %v629
      %v900 = vunpack.c.l.b16 %v630
      %v901 = vunpack.c.h.b16 %v630
      %v902 = vunpack.c.l.b16 %v631
      %v903 = vunpack.c.h.b16 %v631
      %v904 = vunpack.c.l.b16 %v632
      %v905 = vunpack.c.h.b16 %v632
      %v906 = vunpack.c.l.b16 %v633
      %v907 = vunpack.c.h.b16 %v633
      %v908 = vunpack.c.l.b16 %v634
      %v909 = vunpack.c.h.b16 %v634
      %v910 = vunpack.c.l.b16 %v635
      %v911 = vunpack.c.h.b16 %v635
      %v912 = vunpack.c.l.b16 %v636
      %v913 = vunpack.c.h.b16 %v636
      %v914 = vunpack.c.l.b16 %v637
      %v915 = vunpack.c.h.b16 %v637
      %v916 = vunpack.c.l.b16 %v638
      %v917 = vunpack.c.h.b16 %v638
      %v918 = vunpack.c.l.b16 %v639
      %v919 = vunpack.c.h.b16 %v639
      %v920 = vunpack.c.l.b16 %v640
      %v921 = vunpack.c.h.b16 %v640
      %v922 = vunpack.c.l.b16 %v641
      %v923 = vunpack.c.h.b16 %v641
      %v924 = vunpack.c.l.b16 %v642
      %v925 = vunpack.c.h.b16 %v642
      %v926 = vunpack.c.l.b16 %v643
      %v927 = vunpack.c.h.b16 %v643
      %v928 = vunpack.c.l.b16 %v644
      %v929 = vunpack.c.h.b16 %v644
      %v930 = vunpack.c.l.b16 %v645
      %v931 = vunpack.c.h.b16 %v645
      %v932 = vunpack.c.l.b16 %v646
      %v933 = vunpack.c.h.b16 %v646
      %v934 = vunpack.c.l.b16 %v647
      %v935 = vunpack.c.h.b16 %v647
      %v936 = vunpack.c.l.b16 %v648
      %v937 = vunpack.c.h.b16 %v648
      %v938 = vunpack.c.l.b16 %v649
      %v939 = vunpack.c.h.b16 %v649
      %v940 = vunpack.c.l.b16 %v650
      %v941 = vunpack.c.h.b16 %v650
      %v942 = vunpack.c.l.b16 %v651
      %v943 = vunpack.c.h.b16 %v651
      %v944 = vunpack.c.l.b16 %v652
      %v945 = vunpack.c.h.b16 %v652
      %v946 = vunpack.c.l.b16 %v653
      %v947 = vunpack.c.h.b16 %v653
      %v948 = vunpack.c.l.b16 %v654
      %v949 = vunpack.c.h.b16 %v654
      %v950 = vunpack.c.l.b16 %v655
      %v951 = vunpack.c.h.b16 %v655
      %v952 = vunpack.c.l.b16 %v656
      %v953 = vunpack.c.h.b16 %v656
      %v954 = vunpack.c.l.b16 %v657
      %v955 = vunpack.c.h.b16 %v657
      %v956 = vunpack.c.l.b16 %v658
      %v957 = vunpack.c.h.b16 %v658
      %v958 = vunpack.c.l.b16 %v659
      %v959 = vunpack.c.h.b16 %v659
      %v960 = vunpack.c.l.b16 %v660
      %v961 = vunpack.c.h.b16 %v660
      %v962 = vunpack.c.l.b16 %v661
      %v963 = vunpack.c.h.b16 %v661
      %v964 = vunpack.c.l.b16 %v662
      %v965 = vunpack.c.h.b16 %v662
      %v966 = vunpack.c.l.b16 %v663
      %v967 = vunpack.c.h.b16 %v663
      %v968 = vunpack.c.l.b16 %v664
      %v969 = vunpack.c.h.b16 %v664
      %v970 = vunpack.c.l.b16 %v665
      %v971 = vunpack.c.h.b16 %v665
      %v972 = vpack.c.b16 %v778, %v776
      %v973 = vpack.c.b16 %v779, %v777
      %v974 = vpack.c.b16 %v782, %v780
      %v975 = vpack.c.b16 %v783, %v781
      %v976 = vpack.c.b16 %v786, %v784
      %v977 = vpack.c.b16 %v787, %v785
      %v978 = vpack.c.b16 %v790, %v788
      %v979 = vpack.c.b16 %v791, %v789
      %v980 = vpack.c.b16 %v794, %v792
      %v981 = vpack.c.b16 %v795, %v793
      %v982 = vpack.c.b16 %v798, %v796
      %v983 = vpack.c.b16 %v799, %v797
      %v984 = vpack.c.b16 %v802, %v800
      %v985 = vpack.c.b16 %v803, %v801
      %v986 = vpack.c.b16 %v806, %v804
      %v987 = vpack.c.b16 %v807, %v805
      %v988 = vpack.c.b16 %v810, %v808
      %v989 = vpack.c.b16 %v811, %v809
      %v990 = vpack.c.b16 %v814, %v812
      %v991 = vpack.c.b16 %v815, %v813
      %v992 = vpack.c.b16 %v818, %v816
      %v993 = vpack.c.b16 %v819, %v817
      %v994 = vpack.c.b16 %v822, %v820
      %v995 = vpack.c.b16 %v823, %v821
      %v996 = vpack.c.b16 %v826, %v824
      %v997 = vpack.c.b16 %v827, %v825
      %v998 = vpack.c.b16 %v830, %v828
      %v999 = vpack.c.b16 %v831, %v829
      %v1000 = vpack.c.b16 %v834, %v832
      %v1001 = vpack.c.b16 %v835, %v833
      %v1002 = vpack.c.b16 %v838, %v836
      %v1003 = vpack.c.b16 %v839, %v837
      %v1004 = vpack.c.b16 %v842, %v840
      %v1005 = vpack.c.b16 %v843, %v841
      %v1006 = vpack.c.b16 %v846, %v844
      %v1007 = vpack.c.b16 %v847, %v845
      %v1008 = vpack.c.b16 %v850, %v848
      %v1009 = vpack.c.b16 %v851, %v849
      %v1010 = vpack.c.b16 %v854, %v852
      %v1011 = vpack.c.b16 %v855, %v853
      %v1012 = vpack.c.b16 %v858, %v856
      %v1013 = vpack.c.b16 %v859, %v857
      %v1014 = vpack.c.b16 %v862, %v860
      %v1015 = vpack.c.b16 %v863, %v861
      %v1016 = vpack.c.b16 %v866, %v864
      %v1017 = vpack.c.b16 %v867, %v865
      %v1018 = vpack.c.b16 %v870, %v868
      %v1019 = vpack.c.b16 %v871, %v869
      %v1020 = vpack.c.b16 %v874, %v872
      %v1021 = vpack.c.b16 %v875, %v873
      %v1022 = vpack.c.b16 %v878, %v876
      %v1023 = vpack.c.b16 %v879, %v877
      %v1024 = vpack.c.b16 %v882, %v880
      %v1025 = vpack.c.b16 %v883, %v881
      %v1026 = vpack.c.b16 %v886, %v884
      %v1027 = vpack.c.b16 %v887, %v885
      %v1028 = vpack.c.b16 %v890, %v888
      %v1029 = vpack.c.b16 %v891, %v889
      %v1030 = vpack.c.b16 %v894, %v892
      %v1031 = vpack.c.b16 %v895, %v893
      %v1032 = vpack.c.b16 %v898, %v896
      %v1033 = vpack.c.b16 %v899, %v897
      %v1034 = vpack.c.b16 %v902, %v900
      %v1035 = vpack.c.b16 %v903, %v901
      %v1036 = vpack.c.b16 %v906, %v904
      %v1037 = vpack.c.b16 %v907, %v905
      %v1038 = vpack.c.b16 %v910, %v908
      %v1039 = vpack.c.b16 %v911, %v909
      %v1040 = vpack.c.b16 %v914, %v912
      %v1041 = vpack.c.b16 %v915, %v913
      %v1042 = vpack.c.b16 %v918, %v916
      %v1043 = vpack.c.b16 %v919, %v917
      %v1044 = vpack.c.b16 %v922, %v920
      %v1045 = vpack.c.b16 %v923, %v921
      %v1046 = vpack.c.b16 %v926, %v924
      %v1047 = vpack.c.b16 %v927, %v925
      %v1048 = vpack.c.b16 %v930, %v928
      %v1049 = vpack.c.b16 %v931, %v929
      %v1050 = vpack.c.b16 %v934, %v932
      %v1051 = vpack.c.b16 %v935, %v933
      %v1052 = vpack.c.b16 %v938, %v936
      %v1053 = vpack.c.b16 %v939, %v937
      %v1054 = vpack.c.b16 %v942, %v940
      %v1055 = vpack.c.b16 %v943, %v941
      %v1056 = vpack.c.b16 %v946, %v944
      %v1057 = vpack.c.b16 %v947, %v945
      %v1058 = vpack.c.b16 %v950, %v948
      %v1059 = vpack.c.b16 %v951, %v949
      %v1060 = vpack.c.b16 %v954, %v952
      %v1061 = vpack.c.b16 %v955, %v953
      %v1062 = vpack.c.b16 %v958, %v956
      %v1063 = vpack.c.b16 %v959, %v957
      %v1064 = vpack.c.b16 %v962, %v960
      %v1065 = vpack.c.b16 %v963, %v961
      %v1066 = vpack.c.b16 %v966, %v964
      %v1067 = vpack.c.b16 %v967, %v965
      %v1068 = vpack.c.b16 %v970, %v968
      %v1069 = vpack.c.b16 %v971, %v969
      %vm1168 = vcmask 130048
      %v1170 = vsel %vm1168, %v462, 0
      %v1173 = vsel %vm1168, %v469, 0
      %v1176 = vsel %vm1168, %v476, 0
      %v1179 = vsel %vm1168, %v483, 0
      %v1182 = vsel %vm1168, %v490, 0
      %v1185 = vsel %vm1168, %v497, 0
      %v1188 = vsel %vm1168, %v504, 0
      %v1191 = vsel %vm1168, %v511, 0
      %v1194 = vsel %vm1168, %v518, 0
      %v1197 = vsel %vm1168, %v525, 0
      %v1200 = vsel %vm1168, %v532, 0
      %v1203 = vsel %vm1168, %v539, 0
      %v1206 = vsel %vm1168, %v546, 0
      %v1209 = vsel %vm1168, %v553, 0
      %v1212 = vsel %vm1168, %v560, 0
      %v1215 = vsel %vm1168, %v567, 0
      %1217 = vmatprep.subr.bf16.mxu0 %v987
      %1218 = vmatpush1.bf16.msra.mxu0 %v986
      %1219 = vmatprep.subr.bf16.mxu0 %v985
      %1220 = vmatpush1.bf16.msra.mxu0 %v984
      %1221 = vmatprep.subr.bf16.mxu0 %v983
      %1222 = vmatpush1.bf16.msra.mxu0 %v982
      %1223 = vmatprep.subr.bf16.mxu0 %v981
      %1224 = vmatpush1.bf16.msra.mxu0 %v980
      %1225 = vmatprep.subr.bf16.mxu0 %v979
      %1226 = vmatpush1.bf16.msra.mxu0 %v978
      %1227 = vmatprep.subr.bf16.mxu0 %v977
      %1228 = vmatpush1.bf16.msra.mxu0 %v976
      %1229 = vmatprep.subr.bf16.mxu0 %v975
      %1230 = vmatpush1.bf16.msra.mxu0 %v974
      %1231 = vmatprep.subr.bf16.mxu0 %v973
      %1232 = vmatpush1.bf16.msra.mxu0 %v972
      %1233 = vmatprep.subr.bf16.mxu0 %v1003
      %1234 = vmatpush2.bf16.msra.mxu0 %v1002
      %1235 = vmatprep.subr.bf16.mxu0 %v1001
      %1236 = vmatpush2.bf16.msra.mxu0 %v1000
      %1237 = vmatprep.subr.bf16.mxu0 %v999
      %1238 = vmatpush2.bf16.msra.mxu0 %v998
      %1239 = vmatprep.subr.bf16.mxu0 %v997
      %1240 = vmatpush2.bf16.msra.mxu0 %v996
      %1241 = vmatprep.subr.bf16.mxu0 %v995
      %1242 = vmatpush2.bf16.msra.mxu0 %v994
      %1243 = vmatprep.subr.bf16.mxu0 %v993
      %1244 = vmatpush2.bf16.msra.mxu0 %v992
      %1245 = vmatprep.subr.bf16.mxu0 %v991
      %1246 = vmatpush2.bf16.msra.mxu0 %v990
      %1247 = vmatprep.subr.bf16.mxu0 %v989
      %1248 = vmatpush2.bf16.msra.mxu0 %v988
      %1249 = vmatprep.mubr.bf16.mxu0 %v457
      %1250 = vmatmul.mubr.bf16.gmra.mxu0 %v456
      %v1251 = vpop.f32.mrf.mxu0
      %v1252 = vadd.f32 %v671, %v1251
      %v1253 = vpop.f32.mrf.mxu0
      %v1254 = vadd.f32 %v675, %v1253
      %v1255 = vpop.f32.mrf.mxu0
      %v1256 = vadd.f32 %v671, %v1255
      %v1257 = vpop.f32.mrf.mxu0
      %v1258 = vadd.f32 %v675, %v1257
      %1259 = vmatprep.mubr.bf16.mxu0 %v464
      %1260 = vmatmul.mubr.bf16.gmra.mxu0 %v463
      %v1261 = vpop.f32.mrf.mxu0
      %v1262 = vadd.f32 %v671, %v1261
      %v1263 = vpop.f32.mrf.mxu0
      %v1264 = vadd.f32 %v675, %v1263
      %v1265 = vpop.f32.mrf.mxu0
      %v1266 = vadd.f32 %v671, %v1265
      %v1267 = vpop.f32.mrf.mxu0
      %v1268 = vadd.f32 %v675, %v1267
      %1269 = vmatprep.mubr.bf16.mxu0 %v471
      %1270 = vmatmul.mubr.bf16.gmra.mxu0 %v470
      %v1271 = vpop.f32.mrf.mxu0
      %v1272 = vadd.f32 %v671, %v1271
      %v1273 = vpop.f32.mrf.mxu0
      %v1274 = vadd.f32 %v675, %v1273
      %v1275 = vpop.f32.mrf.mxu0
      %v1276 = vadd.f32 %v671, %v1275
      %v1277 = vpop.f32.mrf.mxu0
      %v1278 = vadd.f32 %v675, %v1277
      %1279 = vmatprep.mubr.bf16.mxu0 %v478
      %1280 = vmatmul.mubr.bf16.gmra.mxu0 %v477
      %v1281 = vpop.f32.mrf.mxu0
      %v1282 = vadd.f32 %v671, %v1281
      %v1283 = vpop.f32.mrf.mxu0
      %v1284 = vadd.f32 %v675, %v1283
      %v1285 = vpop.f32.mrf.mxu0
      %v1286 = vadd.f32 %v671, %v1285
      %v1287 = vpop.f32.mrf.mxu0
      %v1288 = vadd.f32 %v675, %v1287
      %1289 = vmatprep.mubr.bf16.mxu0 %v485
      %1290 = vmatmul.mubr.bf16.gmra.mxu0 %v484
      %v1291 = vpop.f32.mrf.mxu0
      %v1292 = vadd.f32 %v671, %v1291
      %v1293 = vpop.f32.mrf.mxu0
      %v1294 = vadd.f32 %v675, %v1293
      %v1295 = vpop.f32.mrf.mxu0
      %v1296 = vadd.f32 %v671, %v1295
      %v1297 = vpop.f32.mrf.mxu0
      %v1298 = vadd.f32 %v675, %v1297
      %1299 = vmatprep.mubr.bf16.mxu0 %v492
      %1300 = vmatmul.mubr.bf16.gmra.mxu0 %v491
      %v1301 = vpop.f32.mrf.mxu0
      %v1302 = vadd.f32 %v671, %v1301
      %v1303 = vpop.f32.mrf.mxu0
      %v1304 = vadd.f32 %v675, %v1303
      %v1305 = vpop.f32.mrf.mxu0
      %v1306 = vadd.f32 %v671, %v1305
      %v1307 = vpop.f32.mrf.mxu0
      %v1308 = vadd.f32 %v675, %v1307
      %1309 = vmatprep.mubr.bf16.mxu0 %v499
      %1310 = vmatmul.mubr.bf16.gmra.mxu0 %v498
      %v1311 = vpop.f32.mrf.mxu0
      %v1312 = vadd.f32 %v671, %v1311
      %v1313 = vpop.f32.mrf.mxu0
      %v1314 = vadd.f32 %v675, %v1313
      %v1315 = vpop.f32.mrf.mxu0
      %v1316 = vadd.f32 %v671, %v1315
      %v1317 = vpop.f32.mrf.mxu0
      %v1318 = vadd.f32 %v675, %v1317
      %1319 = vmatprep.mubr.bf16.mxu0 %v506
      %1320 = vmatmul.mubr.bf16.gmra.mxu0 %v505
      %v1321 = vpop.f32.mrf.mxu0
      %v1322 = vadd.f32 %v671, %v1321
      %v1323 = vpop.f32.mrf.mxu0
      %v1324 = vadd.f32 %v675, %v1323
      %v1325 = vpop.f32.mrf.mxu0
      %v1326 = vadd.f32 %v671, %v1325
      %v1327 = vpop.f32.mrf.mxu0
      %v1328 = vadd.f32 %v675, %v1327
      %1329 = vmatprep.mubr.bf16.mxu0 %v513
      %1330 = vmatmul.mubr.bf16.gmra.mxu0 %v512
      %v1331 = vpop.f32.mrf.mxu0
      %v1332 = vadd.f32 %v671, %v1331
      %v1333 = vpop.f32.mrf.mxu0
      %v1334 = vadd.f32 %v675, %v1333
      %v1335 = vpop.f32.mrf.mxu0
      %v1336 = vadd.f32 %v671, %v1335
      %v1337 = vpop.f32.mrf.mxu0
      %v1338 = vadd.f32 %v675, %v1337
      %1339 = vmatprep.mubr.bf16.mxu0 %v520
      %1340 = vmatmul.mubr.bf16.gmra.mxu0 %v519
      %v1341 = vpop.f32.mrf.mxu0
      %v1342 = vadd.f32 %v671, %v1341
      %v1343 = vpop.f32.mrf.mxu0
      %v1344 = vadd.f32 %v675, %v1343
      %v1345 = vpop.f32.mrf.mxu0
      %v1346 = vadd.f32 %v671, %v1345
      %v1347 = vpop.f32.mrf.mxu0
      %v1348 = vadd.f32 %v675, %v1347
      %1349 = vmatprep.mubr.bf16.mxu0 %v527
      %1350 = vmatmul.mubr.bf16.gmra.mxu0 %v526
      %v1351 = vpop.f32.mrf.mxu0
      %v1352 = vadd.f32 %v671, %v1351
      %v1353 = vpop.f32.mrf.mxu0
      %v1354 = vadd.f32 %v675, %v1353
      %v1355 = vpop.f32.mrf.mxu0
      %v1356 = vadd.f32 %v671, %v1355
      %v1357 = vpop.f32.mrf.mxu0
      %v1358 = vadd.f32 %v675, %v1357
      %1359 = vmatprep.mubr.bf16.mxu0 %v534
      %1360 = vmatmul.mubr.bf16.gmra.mxu0 %v533
      %v1361 = vpop.f32.mrf.mxu0
      %v1362 = vadd.f32 %v671, %v1361
      %v1363 = vpop.f32.mrf.mxu0
      %v1364 = vadd.f32 %v675, %v1363
      %v1365 = vpop.f32.mrf.mxu0
      %v1366 = vadd.f32 %v671, %v1365
      %v1367 = vpop.f32.mrf.mxu0
      %v1368 = vadd.f32 %v675, %v1367
      %1369 = vmatprep.mubr.bf16.mxu0 %v541
      %1370 = vmatmul.mubr.bf16.gmra.mxu0 %v540
      %v1371 = vpop.f32.mrf.mxu0
      %v1372 = vadd.f32 %v671, %v1371
      %v1373 = vpop.f32.mrf.mxu0
      %v1374 = vadd.f32 %v675, %v1373
      %v1375 = vpop.f32.mrf.mxu0
      %v1376 = vadd.f32 %v671, %v1375
      %v1377 = vpop.f32.mrf.mxu0
      %v1378 = vadd.f32 %v675, %v1377
      %1379 = vmatprep.mubr.bf16.mxu0 %v548
      %1380 = vmatmul.mubr.bf16.gmra.mxu0 %v547
      %v1381 = vpop.f32.mrf.mxu0
      %v1382 = vadd.f32 %v671, %v1381
      %v1383 = vpop.f32.mrf.mxu0
      %v1384 = vadd.f32 %v675, %v1383
      %v1385 = vpop.f32.mrf.mxu0
      %v1386 = vadd.f32 %v671, %v1385
      %v1387 = vpop.f32.mrf.mxu0
      %v1388 = vadd.f32 %v675, %v1387
      %1389 = vmatprep.mubr.bf16.mxu0 %v555
      %1390 = vmatmul.mubr.bf16.gmra.mxu0 %v554
      %v1391 = vpop.f32.mrf.mxu0
      %v1392 = vadd.f32 %v671, %v1391
      %v1393 = vpop.f32.mrf.mxu0
      %v1394 = vadd.f32 %v675, %v1393
      %v1395 = vpop.f32.mrf.mxu0
      %v1396 = vadd.f32 %v671, %v1395
      %v1397 = vpop.f32.mrf.mxu0
      %v1398 = vadd.f32 %v675, %v1397
      %1399 = vmatprep.mubr.bf16.mxu0 %v562
      %1400 = vmatmul.mubr.bf16.gmra.mxu0 %v561
      %v1401 = vpop.f32.mrf.mxu0
      %v1402 = vadd.f32 %v671, %v1401
      %v1403 = vpop.f32.mrf.mxu0
      %v1404 = vadd.f32 %v675, %v1403
      %v1405 = vpop.f32.mrf.mxu0
      %v1406 = vadd.f32 %v671, %v1405
      %v1407 = vpop.f32.mrf.mxu0
      %v1408 = vadd.f32 %v675, %v1407
      %1409 = vdwg.mxu0
      %1410 = vmatprep.subr.bf16.mxu0 %v1019
      %1411 = vmatpush1.bf16.msra.mxu0 %v1018
      %1412 = vmatprep.subr.bf16.mxu0 %v1017
      %1413 = vmatpush1.bf16.msra.mxu0 %v1016
      %1414 = vmatprep.subr.bf16.mxu0 %v1015
      %1415 = vmatpush1.bf16.msra.mxu0 %v1014
      %1416 = vmatprep.subr.bf16.mxu0 %v1013
      %1417 = vmatpush1.bf16.msra.mxu0 %v1012
      %1418 = vmatprep.subr.bf16.mxu0 %v1011
      %1419 = vmatpush1.bf16.msra.mxu0 %v1010
      %1420 = vmatprep.subr.bf16.mxu0 %v1009
      %1421 = vmatpush1.bf16.msra.mxu0 %v1008
      %1422 = vmatprep.subr.bf16.mxu0 %v1007
      %1423 = vmatpush1.bf16.msra.mxu0 %v1006
      %1424 = vmatprep.subr.bf16.mxu0 %v1005
      %1425 = vmatpush1.bf16.msra.mxu0 %v1004
      %1426 = vmatprep.subr.bf16.mxu0 %v1035
      %1427 = vmatpush2.bf16.msra.mxu0 %v1034
      %1428 = vmatprep.subr.bf16.mxu0 %v1033
      %1429 = vmatpush2.bf16.msra.mxu0 %v1032
      %1430 = vmatprep.subr.bf16.mxu0 %v1031
      %1431 = vmatpush2.bf16.msra.mxu0 %v1030
      %1432 = vmatprep.subr.bf16.mxu0 %v1029
      %1433 = vmatpush2.bf16.msra.mxu0 %v1028
      %1434 = vmatprep.subr.bf16.mxu0 %v1027
      %1435 = vmatpush2.bf16.msra.mxu0 %v1026
      %1436 = vmatprep.subr.bf16.mxu0 %v1025
      %1437 = vmatpush2.bf16.msra.mxu0 %v1024
      %1438 = vmatprep.subr.bf16.mxu0 %v1023
      %1439 = vmatpush2.bf16.msra.mxu0 %v1022
      %1440 = vmatprep.subr.bf16.mxu0 %v1021
      %1441 = vmatpush2.bf16.msra.mxu0 %v1020
      %1442 = vmatprep.mubr.bf16.mxu0 %v459
      %1443 = vmatmul.mubr.bf16.gmra.mxu0 %v458
      %v1444 = vpop.f32.mrf.mxu0
      %v1445 = vadd.f32 %v1252, %v1444
      %v1446 = vpop.f32.mrf.mxu0
      %v1447 = vadd.f32 %v1254, %v1446
      %v1448 = vpop.f32.mrf.mxu0
      %v1449 = vadd.f32 %v1256, %v1448
      %v1450 = vpop.f32.mrf.mxu0
      %v1451 = vadd.f32 %v1258, %v1450
      %1452 = vmatprep.mubr.bf16.mxu0 %v466
      %1453 = vmatmul.mubr.bf16.gmra.mxu0 %v465
      %v1454 = vpop.f32.mrf.mxu0
      %v1455 = vadd.f32 %v1262, %v1454
      %v1456 = vpop.f32.mrf.mxu0
      %v1457 = vadd.f32 %v1264, %v1456
      %v1458 = vpop.f32.mrf.mxu0
      %v1459 = vadd.f32 %v1266, %v1458
      %v1460 = vpop.f32.mrf.mxu0
      %v1461 = vadd.f32 %v1268, %v1460
      %1462 = vmatprep.mubr.bf16.mxu0 %v473
      %1463 = vmatmul.mubr.bf16.gmra.mxu0 %v472
      %v1464 = vpop.f32.mrf.mxu0
      %v1465 = vadd.f32 %v1272, %v1464
      %v1466 = vpop.f32.mrf.mxu0
      %v1467 = vadd.f32 %v1274, %v1466
      %v1468 = vpop.f32.mrf.mxu0
      %v1469 = vadd.f32 %v1276, %v1468
      %v1470 = vpop.f32.mrf.mxu0
      %v1471 = vadd.f32 %v1278, %v1470
      %1472 = vmatprep.mubr.bf16.mxu0 %v480
      %1473 = vmatmul.mubr.bf16.gmra.mxu0 %v479
      %v1474 = vpop.f32.mrf.mxu0
      %v1475 = vadd.f32 %v1282, %v1474
      %v1476 = vpop.f32.mrf.mxu0
      %v1477 = vadd.f32 %v1284, %v1476
      %v1478 = vpop.f32.mrf.mxu0
      %v1479 = vadd.f32 %v1286, %v1478
      %v1480 = vpop.f32.mrf.mxu0
      %v1481 = vadd.f32 %v1288, %v1480
      %1482 = vmatprep.mubr.bf16.mxu0 %v487
      %1483 = vmatmul.mubr.bf16.gmra.mxu0 %v486
      %v1484 = vpop.f32.mrf.mxu0
      %v1485 = vadd.f32 %v1292, %v1484
      %v1486 = vpop.f32.mrf.mxu0
      %v1487 = vadd.f32 %v1294, %v1486
      %v1488 = vpop.f32.mrf.mxu0
      %v1489 = vadd.f32 %v1296, %v1488
      %v1490 = vpop.f32.mrf.mxu0
      %v1491 = vadd.f32 %v1298, %v1490
      %1492 = vmatprep.mubr.bf16.mxu0 %v494
      %1493 = vmatmul.mubr.bf16.gmra.mxu0 %v493
      %v1494 = vpop.f32.mrf.mxu0
      %v1495 = vadd.f32 %v1302, %v1494
      %v1496 = vpop.f32.mrf.mxu0
      %v1497 = vadd.f32 %v1304, %v1496
      %v1498 = vpop.f32.mrf.mxu0
      %v1499 = vadd.f32 %v1306, %v1498
      %v1500 = vpop.f32.mrf.mxu0
      %v1501 = vadd.f32 %v1308, %v1500
      %1502 = vmatprep.mubr.bf16.mxu0 %v501
      %1503 = vmatmul.mubr.bf16.gmra.mxu0 %v500
      %v1504 = vpop.f32.mrf.mxu0
      %v1505 = vadd.f32 %v1312, %v1504
      %v1506 = vpop.f32.mrf.mxu0
      %v1507 = vadd.f32 %v1314, %v1506
      %v1508 = vpop.f32.mrf.mxu0
      %v1509 = vadd.f32 %v1316, %v1508
      %v1510 = vpop.f32.mrf.mxu0
      %v1511 = vadd.f32 %v1318, %v1510
      %1512 = vmatprep.mubr.bf16.mxu0 %v508
      %1513 = vmatmul.mubr.bf16.gmra.mxu0 %v507
      %v1514 = vpop.f32.mrf.mxu0
      %v1515 = vadd.f32 %v1322, %v1514
      %v1516 = vpop.f32.mrf.mxu0
      %v1517 = vadd.f32 %v1324, %v1516
      %v1518 = vpop.f32.mrf.mxu0
      %v1519 = vadd.f32 %v1326, %v1518
      %v1520 = vpop.f32.mrf.mxu0
      %v1521 = vadd.f32 %v1328, %v1520
      %1522 = vmatprep.mubr.bf16.mxu0 %v515
      %1523 = vmatmul.mubr.bf16.gmra.mxu0 %v514
      %v1524 = vpop.f32.mrf.mxu0
      %v1525 = vadd.f32 %v1332, %v1524
      %v1526 = vpop.f32.mrf.mxu0
      %v1527 = vadd.f32 %v1334, %v1526
      %v1528 = vpop.f32.mrf.mxu0
      %v1529 = vadd.f32 %v1336, %v1528
      %v1530 = vpop.f32.mrf.mxu0
      %v1531 = vadd.f32 %v1338, %v1530
      %1532 = vmatprep.mubr.bf16.mxu0 %v522
      %1533 = vmatmul.mubr.bf16.gmra.mxu0 %v521
      %v1534 = vpop.f32.mrf.mxu0
      %v1535 = vadd.f32 %v1342, %v1534
      %v1536 = vpop.f32.mrf.mxu0
      %v1537 = vadd.f32 %v1344, %v1536
      %v1538 = vpop.f32.mrf.mxu0
      %v1539 = vadd.f32 %v1346, %v1538
      %v1540 = vpop.f32.mrf.mxu0
      %v1541 = vadd.f32 %v1348, %v1540
      %1542 = vmatprep.mubr.bf16.mxu0 %v529
      %1543 = vmatmul.mubr.bf16.gmra.mxu0 %v528
      %v1544 = vpop.f32.mrf.mxu0
      %v1545 = vadd.f32 %v1352, %v1544
      %v1546 = vpop.f32.mrf.mxu0
      %v1547 = vadd.f32 %v1354, %v1546
      %v1548 = vpop.f32.mrf.mxu0
      %v1549 = vadd.f32 %v1356, %v1548
      %v1550 = vpop.f32.mrf.mxu0
      %v1551 = vadd.f32 %v1358, %v1550
      %1552 = vmatprep.mubr.bf16.mxu0 %v536
      %1553 = vmatmul.mubr.bf16.gmra.mxu0 %v535
      %v1554 = vpop.f32.mrf.mxu0
      %v1555 = vadd.f32 %v1362, %v1554
      %v1556 = vpop.f32.mrf.mxu0
      %v1557 = vadd.f32 %v1364, %v1556
      %v1558 = vpop.f32.mrf.mxu0
      %v1559 = vadd.f32 %v1366, %v1558
      %v1560 = vpop.f32.mrf.mxu0
      %v1561 = vadd.f32 %v1368, %v1560
      %1562 = vmatprep.mubr.bf16.mxu0 %v543
      %1563 = vmatmul.mubr.bf16.gmra.mxu0 %v542
      %v1564 = vpop.f32.mrf.mxu0
      %v1565 = vadd.f32 %v1372, %v1564
      %v1566 = vpop.f32.mrf.mxu0
      %v1567 = vadd.f32 %v1374, %v1566
      %v1568 = vpop.f32.mrf.mxu0
      %v1569 = vadd.f32 %v1376, %v1568
      %v1570 = vpop.f32.mrf.mxu0
      %v1571 = vadd.f32 %v1378, %v1570
      %1572 = vmatprep.mubr.bf16.mxu0 %v550
      %1573 = vmatmul.mubr.bf16.gmra.mxu0 %v549
      %v1574 = vpop.f32.mrf.mxu0
      %v1575 = vadd.f32 %v1382, %v1574
      %v1576 = vpop.f32.mrf.mxu0
      %v1577 = vadd.f32 %v1384, %v1576
      %v1578 = vpop.f32.mrf.mxu0
      %v1579 = vadd.f32 %v1386, %v1578
      %v1580 = vpop.f32.mrf.mxu0
      %v1581 = vadd.f32 %v1388, %v1580
      %1582 = vmatprep.mubr.bf16.mxu0 %v557
      %1583 = vmatmul.mubr.bf16.gmra.mxu0 %v556
      %v1584 = vpop.f32.mrf.mxu0
      %v1585 = vadd.f32 %v1392, %v1584
      %v1586 = vpop.f32.mrf.mxu0
      %v1587 = vadd.f32 %v1394, %v1586
      %v1588 = vpop.f32.mrf.mxu0
      %v1589 = vadd.f32 %v1396, %v1588
      %v1590 = vpop.f32.mrf.mxu0
      %v1591 = vadd.f32 %v1398, %v1590
      %1592 = vmatprep.mubr.bf16.mxu0 %v564
      %1593 = vmatmul.mubr.bf16.gmra.mxu0 %v563
      %v1594 = vpop.f32.mrf.mxu0
      %v1595 = vadd.f32 %v1402, %v1594
      %v1596 = vpop.f32.mrf.mxu0
      %v1597 = vadd.f32 %v1404, %v1596
      %v1598 = vpop.f32.mrf.mxu0
      %v1599 = vadd.f32 %v1406, %v1598
      %v1600 = vpop.f32.mrf.mxu0
      %v1601 = vadd.f32 %v1408, %v1600
      %1602 = vdwg.mxu0
      %1603 = vmatprep.subr.bf16.mxu0 %v1051
      %1604 = vmatpush1.bf16.msra.mxu0 %v1050
      %1605 = vmatprep.subr.bf16.mxu0 %v1049
      %1606 = vmatpush1.bf16.msra.mxu0 %v1048
      %1607 = vmatprep.subr.bf16.mxu0 %v1047
      %1608 = vmatpush1.bf16.msra.mxu0 %v1046
      %1609 = vmatprep.subr.bf16.mxu0 %v1045
      %1610 = vmatpush1.bf16.msra.mxu0 %v1044
      %1611 = vmatprep.subr.bf16.mxu0 %v1043
      %1612 = vmatpush1.bf16.msra.mxu0 %v1042
      %1613 = vmatprep.subr.bf16.mxu0 %v1041
      %1614 = vmatpush1.bf16.msra.mxu0 %v1040
      %1615 = vmatprep.subr.bf16.mxu0 %v1039
      %1616 = vmatpush1.bf16.msra.mxu0 %v1038
      %1617 = vmatprep.subr.bf16.mxu0 %v1037
      %1618 = vmatpush1.bf16.msra.mxu0 %v1036
      %1619 = vmatprep.subr.bf16.mxu0 %v1067
      %1620 = vmatpush2.bf16.msra.mxu0 %v1066
      %1621 = vmatprep.subr.bf16.mxu0 %v1065
      %1622 = vmatpush2.bf16.msra.mxu0 %v1064
      %1623 = vmatprep.subr.bf16.mxu0 %v1063
      %1624 = vmatpush2.bf16.msra.mxu0 %v1062
      %1625 = vmatprep.subr.bf16.mxu0 %v1061
      %1626 = vmatpush2.bf16.msra.mxu0 %v1060
      %1627 = vmatprep.subr.bf16.mxu0 %v1059
      %1628 = vmatpush2.bf16.msra.mxu0 %v1058
      %1629 = vmatprep.subr.bf16.mxu0 %v1057
      %1630 = vmatpush2.bf16.msra.mxu0 %v1056
      %1631 = vmatprep.subr.bf16.mxu0 %v1055
      %1632 = vmatpush2.bf16.msra.mxu0 %v1054
      %1633 = vmatprep.subr.bf16.mxu0 %v1053
      %1634 = vmatpush2.bf16.msra.mxu0 %v1052
      %1635 = vmatprep.mubr.bf16.mxu0 %v461
      %1636 = vmatmul.mubr.bf16.gmra.mxu0 %v460
      %v1637 = vpop.f32.mrf.mxu0
      %v1638 = vadd.f32 %v1445, %v1637
      %v1639 = vpop.f32.mrf.mxu0
      %v1640 = vadd.f32 %v1447, %v1639
      %v1641 = vpop.f32.mrf.mxu0
      %v1642 = vadd.f32 %v1449, %v1641
      %v1643 = vpop.f32.mrf.mxu0
      %v1644 = vadd.f32 %v1451, %v1643
      %1645 = vmatprep.mubr.bf16.mxu0 %v468
      %1646 = vmatmul.mubr.bf16.gmra.mxu0 %v467
      %v1647 = vpop.f32.mrf.mxu0
      %v1648 = vadd.f32 %v1455, %v1647
      %v1649 = vpop.f32.mrf.mxu0
      %v1650 = vadd.f32 %v1457, %v1649
      %v1651 = vpop.f32.mrf.mxu0
      %v1652 = vadd.f32 %v1459, %v1651
      %v1653 = vpop.f32.mrf.mxu0
      %v1654 = vadd.f32 %v1461, %v1653
      %1655 = vmatprep.mubr.bf16.mxu0 %v475
      %1656 = vmatmul.mubr.bf16.gmra.mxu0 %v474
      %v1657 = vpop.f32.mrf.mxu0
      %v1658 = vadd.f32 %v1465, %v1657
      %v1659 = vpop.f32.mrf.mxu0
      %v1660 = vadd.f32 %v1467, %v1659
      %v1661 = vpop.f32.mrf.mxu0
      %v1662 = vadd.f32 %v1469, %v1661
      %v1663 = vpop.f32.mrf.mxu0
      %v1664 = vadd.f32 %v1471, %v1663
      %1665 = vmatprep.mubr.bf16.mxu0 %v482
      %1666 = vmatmul.mubr.bf16.gmra.mxu0 %v481
      %v1667 = vpop.f32.mrf.mxu0
      %v1668 = vadd.f32 %v1475, %v1667
      %v1669 = vpop.f32.mrf.mxu0
      %v1670 = vadd.f32 %v1477, %v1669
      %v1671 = vpop.f32.mrf.mxu0
      %v1672 = vadd.f32 %v1479, %v1671
      %v1673 = vpop.f32.mrf.mxu0
      %v1674 = vadd.f32 %v1481, %v1673
      %1675 = vmatprep.mubr.bf16.mxu0 %v489
      %1676 = vmatmul.mubr.bf16.gmra.mxu0 %v488
      %v1677 = vpop.f32.mrf.mxu0
      %v1678 = vadd.f32 %v1485, %v1677
      %v1679 = vpop.f32.mrf.mxu0
      %v1680 = vadd.f32 %v1487, %v1679
      %v1681 = vpop.f32.mrf.mxu0
      %v1682 = vadd.f32 %v1489, %v1681
      %v1683 = vpop.f32.mrf.mxu0
      %v1684 = vadd.f32 %v1491, %v1683
      %1685 = vmatprep.mubr.bf16.mxu0 %v496
      %1686 = vmatmul.mubr.bf16.gmra.mxu0 %v495
      %v1687 = vpop.f32.mrf.mxu0
      %v1688 = vadd.f32 %v1495, %v1687
      %v1689 = vpop.f32.mrf.mxu0
      %v1690 = vadd.f32 %v1497, %v1689
      %v1691 = vpop.f32.mrf.mxu0
      %v1692 = vadd.f32 %v1499, %v1691
      %v1693 = vpop.f32.mrf.mxu0
      %v1694 = vadd.f32 %v1501, %v1693
      %1695 = vmatprep.mubr.bf16.mxu0 %v503
      %1696 = vmatmul.mubr.bf16.gmra.mxu0 %v502
      %v1697 = vpop.f32.mrf.mxu0
      %v1698 = vadd.f32 %v1505, %v1697
      %v1699 = vpop.f32.mrf.mxu0
      %v1700 = vadd.f32 %v1507, %v1699
      %v1701 = vpop.f32.mrf.mxu0
      %v1702 = vadd.f32 %v1509, %v1701
      %v1703 = vpop.f32.mrf.mxu0
      %v1704 = vadd.f32 %v1511, %v1703
      %1705 = vmatprep.mubr.bf16.mxu0 %v510
      %1706 = vmatmul.mubr.bf16.gmra.mxu0 %v509
      %v1707 = vpop.f32.mrf.mxu0
      %v1708 = vadd.f32 %v1515, %v1707
      %v1709 = vpop.f32.mrf.mxu0
      %v1710 = vadd.f32 %v1517, %v1709
      %v1711 = vpop.f32.mrf.mxu0
      %v1712 = vadd.f32 %v1519, %v1711
      %v1713 = vpop.f32.mrf.mxu0
      %v1714 = vadd.f32 %v1521, %v1713
      %1715 = vmatprep.mubr.bf16.mxu0 %v517
      %1716 = vmatmul.mubr.bf16.gmra.mxu0 %v516
      %v1717 = vpop.f32.mrf.mxu0
      %v1718 = vadd.f32 %v1525, %v1717
      %v1719 = vpop.f32.mrf.mxu0
      %v1720 = vadd.f32 %v1527, %v1719
      %v1721 = vpop.f32.mrf.mxu0
      %v1722 = vadd.f32 %v1529, %v1721
      %v1723 = vpop.f32.mrf.mxu0
      %v1724 = vadd.f32 %v1531, %v1723
      %1725 = vmatprep.mubr.bf16.mxu0 %v524
      %1726 = vmatmul.mubr.bf16.gmra.mxu0 %v523
      %v1727 = vpop.f32.mrf.mxu0
      %v1728 = vadd.f32 %v1535, %v1727
      %v1729 = vpop.f32.mrf.mxu0
      %v1730 = vadd.f32 %v1537, %v1729
      %v1731 = vpop.f32.mrf.mxu0
      %v1732 = vadd.f32 %v1539, %v1731
      %v1733 = vpop.f32.mrf.mxu0
      %v1734 = vadd.f32 %v1541, %v1733
      %1735 = vmatprep.mubr.bf16.mxu0 %v531
      %1736 = vmatmul.mubr.bf16.gmra.mxu0 %v530
      %v1737 = vpop.f32.mrf.mxu0
      %v1738 = vadd.f32 %v1545, %v1737
      %v1739 = vpop.f32.mrf.mxu0
      %v1740 = vadd.f32 %v1547, %v1739
      %v1741 = vpop.f32.mrf.mxu0
      %v1742 = vadd.f32 %v1549, %v1741
      %v1743 = vpop.f32.mrf.mxu0
      %v1744 = vadd.f32 %v1551, %v1743
      %1745 = vmatprep.mubr.bf16.mxu0 %v538
      %1746 = vmatmul.mubr.bf16.gmra.mxu0 %v537
      %v1747 = vpop.f32.mrf.mxu0
      %v1748 = vadd.f32 %v1555, %v1747
      %v1749 = vpop.f32.mrf.mxu0
      %v1750 = vadd.f32 %v1557, %v1749
      %v1751 = vpop.f32.mrf.mxu0
      %v1752 = vadd.f32 %v1559, %v1751
      %v1753 = vpop.f32.mrf.mxu0
      %v1754 = vadd.f32 %v1561, %v1753
      %1755 = vmatprep.mubr.bf16.mxu0 %v545
      %1756 = vmatmul.mubr.bf16.gmra.mxu0 %v544
      %v1757 = vpop.f32.mrf.mxu0
      %v1758 = vadd.f32 %v1565, %v1757
      %v1759 = vpop.f32.mrf.mxu0
      %v1760 = vadd.f32 %v1567, %v1759
      %v1761 = vpop.f32.mrf.mxu0
      %v1762 = vadd.f32 %v1569, %v1761
      %v1763 = vpop.f32.mrf.mxu0
      %v1764 = vadd.f32 %v1571, %v1763
      %1765 = vmatprep.mubr.bf16.mxu0 %v552
      %1766 = vmatmul.mubr.bf16.gmra.mxu0 %v551
      %v1767 = vpop.f32.mrf.mxu0
      %v1768 = vadd.f32 %v1575, %v1767
      %v1769 = vpop.f32.mrf.mxu0
      %v1770 = vadd.f32 %v1577, %v1769
      %v1771 = vpop.f32.mrf.mxu0
      %v1772 = vadd.f32 %v1579, %v1771
      %v1773 = vpop.f32.mrf.mxu0
      %v1774 = vadd.f32 %v1581, %v1773
      %1775 = vmatprep.mubr.bf16.mxu0 %v559
      %1776 = vmatmul.mubr.bf16.gmra.mxu0 %v558
      %v1777 = vpop.f32.mrf.mxu0
      %v1778 = vadd.f32 %v1585, %v1777
      %v1779 = vpop.f32.mrf.mxu0
      %v1780 = vadd.f32 %v1587, %v1779
      %v1781 = vpop.f32.mrf.mxu0
      %v1782 = vadd.f32 %v1589, %v1781
      %v1783 = vpop.f32.mrf.mxu0
      %v1784 = vadd.f32 %v1591, %v1783
      %1785 = vmatprep.mubr.bf16.mxu0 %v566
      %1786 = vmatmul.mubr.bf16.gmra.mxu0 %v565
      %v1787 = vpop.f32.mrf.mxu0
      %v1788 = vadd.f32 %v1595, %v1787
      %v1789 = vpop.f32.mrf.mxu0
      %v1790 = vadd.f32 %v1597, %v1789
      %v1791 = vpop.f32.mrf.mxu0
      %v1792 = vadd.f32 %v1599, %v1791
      %v1793 = vpop.f32.mrf.mxu0
      %v1794 = vadd.f32 %v1601, %v1793
      %1795 = vdwg.mxu0
      %1796 = vmatprep.subr.bf16.mxu0 0
      %1797 = vmatpush1.bf16.msra.mxu0 0
      %1798 = vmatprep.subr.bf16.mxu0 0
      %1799 = vmatpush1.bf16.msra.mxu0 0
      %1800 = vmatprep.subr.bf16.mxu0 0
      %1801 = vmatpush1.bf16.msra.mxu0 0
      %1802 = vmatprep.subr.bf16.mxu0 0
      %1803 = vmatpush1.bf16.msra.mxu0 0
      %1804 = vmatprep.subr.bf16.mxu0 0
      %1805 = vmatpush1.bf16.msra.mxu0 0
      %1806 = vmatprep.subr.bf16.mxu0 0
      %1807 = vmatpush1.bf16.msra.mxu0 0
      %1808 = vmatprep.subr.bf16.mxu0 0
      %1809 = vmatpush1.bf16.msra.mxu0 0
      %1810 = vmatprep.subr.bf16.mxu0 %v1069
      %1811 = vmatpush1.bf16.msra.mxu0 %v1068
      %1812 = vmatprep.subr.bf16.mxu0 0
      %1813 = vmatpush2.bf16.msra.mxu0 0
      %1814 = vmatprep.subr.bf16.mxu0 0
      %1815 = vmatpush2.bf16.msra.mxu0 0
      %1816 = vmatprep.subr.bf16.mxu0 0
      %1817 = vmatpush2.bf16.msra.mxu0 0
      %1818 = vmatprep.subr.bf16.mxu0 0
      %1819 = vmatpush2.bf16.msra.mxu0 0
      %1820 = vmatprep.subr.bf16.mxu0 0
      %1821 = vmatpush2.bf16.msra.mxu0 0
      %1822 = vmatprep.subr.bf16.mxu0 0
      %1823 = vmatpush2.bf16.msra.mxu0 0
      %1824 = vmatprep.subr.bf16.mxu0 0
      %1825 = vmatpush2.bf16.msra.mxu0 0
      %1826 = vmatprep.subr.bf16.mxu0 0
      %1827 = vmatpush2.bf16.msra.mxu0 0
      %1828 = vmatprep.mubr.bf16.mxu0 0
      %1829 = vmatmul.mubr.bf16.gmra.mxu0 %v1170
      %v1830 = vpop.f32.mrf.mxu0
      %v1831 = vadd.f32 %v1638, %v1830
      %v1832 = vpop.f32.mrf.mxu0
      %v1833 = vadd.f32 %v1640, %v1832
      %v1834 = vpop.f32.mrf.mxu0
      %v1835 = vadd.f32 %v1642, %v1834
      %v1836 = vpop.f32.mrf.mxu0
      %v1837 = vadd.f32 %v1644, %v1836
      %1838 = vmatprep.mubr.bf16.mxu0 0
      %1839 = vmatmul.mubr.bf16.gmra.mxu0 %v1173
      %v1840 = vpop.f32.mrf.mxu0
      %v1841 = vadd.f32 %v1648, %v1840
      %v1842 = vpop.f32.mrf.mxu0
      %v1843 = vadd.f32 %v1650, %v1842
      %v1844 = vpop.f32.mrf.mxu0
      %v1845 = vadd.f32 %v1652, %v1844
      %v1846 = vpop.f32.mrf.mxu0
      %v1847 = vadd.f32 %v1654, %v1846
      %1848 = vmatprep.mubr.bf16.mxu0 0
      %1849 = vmatmul.mubr.bf16.gmra.mxu0 %v1176
      %v1850 = vpop.f32.mrf.mxu0
      %v1851 = vadd.f32 %v1658, %v1850
      %v1852 = vpop.f32.mrf.mxu0
      %v1853 = vadd.f32 %v1660, %v1852
      %v1854 = vpop.f32.mrf.mxu0
      %v1855 = vadd.f32 %v1662, %v1854
      %v1856 = vpop.f32.mrf.mxu0
      %v1857 = vadd.f32 %v1664, %v1856
      %1858 = vmatprep.mubr.bf16.mxu0 0
      %1859 = vmatmul.mubr.bf16.gmra.mxu0 %v1179
      %v1860 = vpop.f32.mrf.mxu0
      %v1861 = vadd.f32 %v1668, %v1860
      %v1862 = vpop.f32.mrf.mxu0
      %v1863 = vadd.f32 %v1670, %v1862
      %v1864 = vpop.f32.mrf.mxu0
      %v1865 = vadd.f32 %v1672, %v1864
      %v1866 = vpop.f32.mrf.mxu0
      %v1867 = vadd.f32 %v1674, %v1866
      %1868 = vmatprep.mubr.bf16.mxu0 0
      %1869 = vmatmul.mubr.bf16.gmra.mxu0 %v1182
      %v1870 = vpop.f32.mrf.mxu0
      %v1871 = vadd.f32 %v1678, %v1870
      %v1872 = vpop.f32.mrf.mxu0
      %v1873 = vadd.f32 %v1680, %v1872
      %v1874 = vpop.f32.mrf.mxu0
      %v1875 = vadd.f32 %v1682, %v1874
      %v1876 = vpop.f32.mrf.mxu0
      %v1877 = vadd.f32 %v1684, %v1876
      %1878 = vmatprep.mubr.bf16.mxu0 0
      %1879 = vmatmul.mubr.bf16.gmra.mxu0 %v1185
      %v1880 = vpop.f32.mrf.mxu0
      %v1881 = vadd.f32 %v1688, %v1880
      %v1882 = vpop.f32.mrf.mxu0
      %v1883 = vadd.f32 %v1690, %v1882
      %v1884 = vpop.f32.mrf.mxu0
      %v1885 = vadd.f32 %v1692, %v1884
      %v1886 = vpop.f32.mrf.mxu0
      %v1887 = vadd.f32 %v1694, %v1886
      %1888 = vmatprep.mubr.bf16.mxu0 0
      %1889 = vmatmul.mubr.bf16.gmra.mxu0 %v1188
      %v1890 = vpop.f32.mrf.mxu0
      %v1891 = vadd.f32 %v1698, %v1890
      %v1892 = vpop.f32.mrf.mxu0
      %v1893 = vadd.f32 %v1700, %v1892
      %v1894 = vpop.f32.mrf.mxu0
      %v1895 = vadd.f32 %v1702, %v1894
      %v1896 = vpop.f32.mrf.mxu0
      %v1897 = vadd.f32 %v1704, %v1896
      %1898 = vmatprep.mubr.bf16.mxu0 0
      %1899 = vmatmul.mubr.bf16.gmra.mxu0 %v1191
      %v1900 = vpop.f32.mrf.mxu0
      %v1901 = vadd.f32 %v1708, %v1900
      %v1902 = vpop.f32.mrf.mxu0
      %v1903 = vadd.f32 %v1710, %v1902
      %v1904 = vpop.f32.mrf.mxu0
      %v1905 = vadd.f32 %v1712, %v1904
      %v1906 = vpop.f32.mrf.mxu0
      %v1907 = vadd.f32 %v1714, %v1906
      %1908 = vmatprep.mubr.bf16.mxu0 0
      %1909 = vmatmul.mubr.bf16.gmra.mxu0 %v1194
      %v1910 = vpop.f32.mrf.mxu0
      %v1911 = vadd.f32 %v1718, %v1910
      %v1912 = vpop.f32.mrf.mxu0
      %v1913 = vadd.f32 %v1720, %v1912
      %v1914 = vpop.f32.mrf.mxu0
      %v1915 = vadd.f32 %v1722, %v1914
      %v1916 = vpop.f32.mrf.mxu0
      %v1917 = vadd.f32 %v1724, %v1916
      %1918 = vmatprep.mubr.bf16.mxu0 0
      %1919 = vmatmul.mubr.bf16.gmra.mxu0 %v1197
      %v1920 = vpop.f32.mrf.mxu0
      %v1921 = vadd.f32 %v1728, %v1920
      %v1922 = vpop.f32.mrf.mxu0
      %v1923 = vadd.f32 %v1730, %v1922
      %v1924 = vpop.f32.mrf.mxu0
      %v1925 = vadd.f32 %v1732, %v1924
      %v1926 = vpop.f32.mrf.mxu0
      %v1927 = vadd.f32 %v1734, %v1926
      %1928 = vmatprep.mubr.bf16.mxu0 0
      %1929 = vmatmul.mubr.bf16.gmra.mxu0 %v1200
      %v1930 = vpop.f32.mrf.mxu0
      %v1931 = vadd.f32 %v1738, %v1930
      %v1932 = vpop.f32.mrf.mxu0
      %v1933 = vadd.f32 %v1740, %v1932
      %v1934 = vpop.f32.mrf.mxu0
      %v1935 = vadd.f32 %v1742, %v1934
      %v1936 = vpop.f32.mrf.mxu0
      %v1937 = vadd.f32 %v1744, %v1936
      %1938 = vmatprep.mubr.bf16.mxu0 0
      %1939 = vmatmul.mubr.bf16.gmra.mxu0 %v1203
      %v1940 = vpop.f32.mrf.mxu0
      %v1941 = vadd.f32 %v1748, %v1940
      %v1942 = vpop.f32.mrf.mxu0
      %v1943 = vadd.f32 %v1750, %v1942
      %v1944 = vpop.f32.mrf.mxu0
      %v1945 = vadd.f32 %v1752, %v1944
      %v1946 = vpop.f32.mrf.mxu0
      %v1947 = vadd.f32 %v1754, %v1946
      %1948 = vmatprep.mubr.bf16.mxu0 0
      %1949 = vmatmul.mubr.bf16.gmra.mxu0 %v1206
      %v1950 = vpop.f32.mrf.mxu0
      %v1951 = vadd.f32 %v1758, %v1950
      %v1952 = vpop.f32.mrf.mxu0
      %v1953 = vadd.f32 %v1760, %v1952
      %v1954 = vpop.f32.mrf.mxu0
      %v1955 = vadd.f32 %v1762, %v1954
      %v1956 = vpop.f32.mrf.mxu0
      %v1957 = vadd.f32 %v1764, %v1956
      %1958 = vmatprep.mubr.bf16.mxu0 0
      %1959 = vmatmul.mubr.bf16.gmra.mxu0 %v1209
      %v1960 = vpop.f32.mrf.mxu0
      %v1961 = vadd.f32 %v1768, %v1960
      %v1962 = vpop.f32.mrf.mxu0
      %v1963 = vadd.f32 %v1770, %v1962
      %v1964 = vpop.f32.mrf.mxu0
      %v1965 = vadd.f32 %v1772, %v1964
      %v1966 = vpop.f32.mrf.mxu0
      %v1967 = vadd.f32 %v1774, %v1966
      %1968 = vmatprep.mubr.bf16.mxu0 0
      %1969 = vmatmul.mubr.bf16.gmra.mxu0 %v1212
      %v1970 = vpop.f32.mrf.mxu0
      %v1971 = vadd.f32 %v1778, %v1970
      %v1972 = vpop.f32.mrf.mxu0
      %v1973 = vadd.f32 %v1780, %v1972
      %v1974 = vpop.f32.mrf.mxu0
      %v1975 = vadd.f32 %v1782, %v1974
      %v1976 = vpop.f32.mrf.mxu0
      %v1977 = vadd.f32 %v1784, %v1976
      %1978 = vmatprep.mubr.bf16.mxu0 0
      %1979 = vmatmul.mubr.bf16.gmra.mxu0 %v1215
      %v1980 = vpop.f32.mrf.mxu0
      %v1981 = vadd.f32 %v1788, %v1980
      %v1982 = vpop.f32.mrf.mxu0
      %v1983 = vadd.f32 %v1790, %v1982
      %v1984 = vpop.f32.mrf.mxu0
      %v1985 = vadd.f32 %v1792, %v1984
      %v1986 = vpop.f32.mrf.mxu0
      %v1987 = vadd.f32 %v1794, %v1986
      %1988 = vdwg.mxu0
      %vm1989 = vcmp.gt.f32.partialorder %v1831, 0.0
      %vm1990 = vcmp.gt.f32.partialorder %v1833, 0.0
      %vm1991 = vcmp.gt.f32.partialorder %v1835, 0.0
      %vm1992 = vcmp.gt.f32.partialorder %v1837, 0.0
      %vm1993 = vcmp.gt.f32.partialorder %v1841, 0.0
      %vm1994 = vcmp.gt.f32.partialorder %v1843, 0.0
      %vm1995 = vcmp.gt.f32.partialorder %v1845, 0.0
      %vm1996 = vcmp.gt.f32.partialorder %v1847, 0.0
      %vm1997 = vcmp.gt.f32.partialorder %v1851, 0.0
      %vm1998 = vcmp.gt.f32.partialorder %v1853, 0.0
      %vm1999 = vcmp.gt.f32.partialorder %v1855, 0.0
      %vm2000 = vcmp.gt.f32.partialorder %v1857, 0.0
      %vm2001 = vcmp.gt.f32.partialorder %v1861, 0.0
      %vm2002 = vcmp.gt.f32.partialorder %v1863, 0.0
      %vm2003 = vcmp.gt.f32.partialorder %v1865, 0.0
      %vm2004 = vcmp.gt.f32.partialorder %v1867, 0.0
      %vm2005 = vcmp.gt.f32.partialorder %v1871, 0.0
      %vm2006 = vcmp.gt.f32.partialorder %v1873, 0.0
      %vm2007 = vcmp.gt.f32.partialorder %v1875, 0.0
      %vm2008 = vcmp.gt.f32.partialorder %v1877, 0.0
      %vm2009 = vcmp.gt.f32.partialorder %v1881, 0.0
      %vm2010 = vcmp.gt.f32.partialorder %v1883, 0.0
      %vm2011 = vcmp.gt.f32.partialorder %v1885, 0.0
      %vm2012 = vcmp.gt.f32.partialorder %v1887, 0.0
      %vm2013 = vcmp.gt.f32.partialorder %v1891, 0.0
      %vm2014 = vcmp.gt.f32.partialorder %v1893, 0.0
      %vm2015 = vcmp.gt.f32.partialorder %v1895, 0.0
      %vm2016 = vcmp.gt.f32.partialorder %v1897, 0.0
      %vm2017 = vcmp.gt.f32.partialorder %v1901, 0.0
      %vm2018 = vcmp.gt.f32.partialorder %v1903, 0.0
      %vm2019 = vcmp.gt.f32.partialorder %v1905, 0.0
      %vm2020 = vcmp.gt.f32.partialorder %v1907, 0.0
      %vm2021 = vcmp.gt.f32.partialorder %v1911, 0.0
      %vm2022 = vcmp.gt.f32.partialorder %v1913, 0.0
      %vm2023 = vcmp.gt.f32.partialorder %v1915, 0.0
      %vm2024 = vcmp.gt.f32.partialorder %v1917, 0.0
      %vm2025 = vcmp.gt.f32.partialorder %v1921, 0.0
      %vm2026 = vcmp.gt.f32.partialorder %v1923, 0.0
      %vm2027 = vcmp.gt.f32.partialorder %v1925, 0.0
      %vm2028 = vcmp.gt.f32.partialorder %v1927, 0.0
      %vm2029 = vcmp.gt.f32.partialorder %v1931, 0.0
      %vm2030 = vcmp.gt.f32.partialorder %v1933, 0.0
      %vm2031 = vcmp.gt.f32.partialorder %v1935, 0.0
      %vm2032 = vcmp.gt.f32.partialorder %v1937, 0.0
      %vm2033 = vcmp.gt.f32.partialorder %v1941, 0.0
      %vm2034 = vcmp.gt.f32.partialorder %v1943, 0.0
      %vm2035 = vcmp.gt.f32.partialorder %v1945, 0.0
      %vm2036 = vcmp.gt.f32.partialorder %v1947, 0.0
      %vm2037 = vcmp.gt.f32.partialorder %v1951, 0.0
      %vm2038 = vcmp.gt.f32.partialorder %v1953, 0.0
      %vm2039 = vcmp.gt.f32.partialorder %v1955, 0.0
      %vm2040 = vcmp.gt.f32.partialorder %v1957, 0.0
      %vm2041 = vcmp.gt.f32.partialorder %v1961, 0.0
      %vm2042 = vcmp.gt.f32.partialorder %v1963, 0.0
      %vm2043 = vcmp.gt.f32.partialorder %v1965, 0.0
      %vm2044 = vcmp.gt.f32.partialorder %v1967, 0.0
      %vm2045 = vcmp.gt.f32.partialorder %v1971, 0.0
      %vm2046 = vcmp.gt.f32.partialorder %v1973, 0.0
      %vm2047 = vcmp.gt.f32.partialorder %v1975, 0.0
      %vm2048 = vcmp.gt.f32.partialorder %v1977, 0.0
      %vm2049 = vcmp.gt.f32.partialorder %v1981, 0.0
      %vm2050 = vcmp.gt.f32.partialorder %v1983, 0.0
      %vm2051 = vcmp.gt.f32.partialorder %v1985, 0.0
      %vm2052 = vcmp.gt.f32.partialorder %v1987, 0.0
      %v2053 = vmul.f32 %v1831, 0.2
      %v2054 = vmul.f32 %v1833, 0.2
      %v2055 = vmul.f32 %v1835, 0.2
      %v2056 = vmul.f32 %v1837, 0.2
      %v2057 = vmul.f32 %v1841, 0.2
      %v2058 = vmul.f32 %v1843, 0.2
      %v2059 = vmul.f32 %v1845, 0.2
      %v2060 = vmul.f32 %v1847, 0.2
      %v2061 = vmul.f32 %v1851, 0.2
      %v2062 = vmul.f32 %v1853, 0.2
      %v2063 = vmul.f32 %v1855, 0.2
      %v2064 = vmul.f32 %v1857, 0.2
      %v2065 = vmul.f32 %v1861, 0.2
      %v2066 = vmul.f32 %v1863, 0.2
      %v2067 = vmul.f32 %v1865, 0.2
      %v2068 = vmul.f32 %v1867, 0.2
      %v2069 = vmul.f32 %v1871, 0.2
      %v2070 = vmul.f32 %v1873, 0.2
      %v2071 = vmul.f32 %v1875, 0.2
      %v2072 = vmul.f32 %v1877, 0.2
      %v2073 = vmul.f32 %v1881, 0.2
      %v2074 = vmul.f32 %v1883, 0.2
      %v2075 = vmul.f32 %v1885, 0.2
      %v2076 = vmul.f32 %v1887, 0.2
      %v2077 = vmul.f32 %v1891, 0.2
      %v2078 = vmul.f32 %v1893, 0.2
      %v2079 = vmul.f32 %v1895, 0.2
      %v2080 = vmul.f32 %v1897, 0.2
      %v2081 = vmul.f32 %v1901, 0.2
      %v2082 = vmul.f32 %v1903, 0.2
      %v2083 = vmul.f32 %v1905, 0.2
      %v2084 = vmul.f32 %v1907, 0.2
      %v2085 = vmul.f32 %v1911, 0.2
      %v2086 = vmul.f32 %v1913, 0.2
      %v2087 = vmul.f32 %v1915, 0.2
      %v2088 = vmul.f32 %v1917, 0.2
      %v2089 = vmul.f32 %v1921, 0.2
      %v2090 = vmul.f32 %v1923, 0.2
      %v2091 = vmul.f32 %v1925, 0.2
      %v2092 = vmul.f32 %v1927, 0.2
      %v2093 = vmul.f32 %v1931, 0.2
      %v2094 = vmul.f32 %v1933, 0.2
      %v2095 = vmul.f32 %v1935, 0.2
      %v2096 = vmul.f32 %v1937, 0.2
      %v2097 = vmul.f32 %v1941, 0.2
      %v2098 = vmul.f32 %v1943, 0.2
      %v2099 = vmul.f32 %v1945, 0.2
      %v2100 = vmul.f32 %v1947, 0.2
      %v2101 = vmul.f32 %v1951, 0.2
      %v2102 = vmul.f32 %v1953, 0.2
      %v2103 = vmul.f32 %v1955, 0.2
      %v2104 = vmul.f32 %v1957, 0.2
      %v2105 = vmul.f32 %v1961, 0.2
      %v2106 = vmul.f32 %v1963, 0.2
      %v2107 = vmul.f32 %v1965, 0.2
      %v2108 = vmul.f32 %v1967, 0.2
      %v2109 = vmul.f32 %v1971, 0.2
      %v2110 = vmul.f32 %v1973, 0.2
      %v2111 = vmul.f32 %v1975, 0.2
      %v2112 = vmul.f32 %v1977, 0.2
      %v2113 = vmul.f32 %v1981, 0.2
      %v2114 = vmul.f32 %v1983, 0.2
      %v2115 = vmul.f32 %v1985, 0.2
      %v2116 = vmul.f32 %v1987, 0.2
      %v2117 = vsel %vm1989, %v1831, %v2053
      %v2118 = vsel %vm1990, %v1833, %v2054
      %v2119 = vsel %vm1991, %v1835, %v2055
      %v2120 = vsel %vm1992, %v1837, %v2056
      %v2121 = vsel %vm1993, %v1841, %v2057
      %v2122 = vsel %vm1994, %v1843, %v2058
      %v2123 = vsel %vm1995, %v1845, %v2059
      %v2124 = vsel %vm1996, %v1847, %v2060
      %v2125 = vsel %vm1997, %v1851, %v2061
      %v2126 = vsel %vm1998, %v1853, %v2062
      %v2127 = vsel %vm1999, %v1855, %v2063
      %v2128 = vsel %vm2000, %v1857, %v2064
      %v2129 = vsel %vm2001, %v1861, %v2065
      %v2130 = vsel %vm2002, %v1863, %v2066
      %v2131 = vsel %vm2003, %v1865, %v2067
      %v2132 = vsel %vm2004, %v1867, %v2068
      %v2133 = vsel %vm2005, %v1871, %v2069
      %v2134 = vsel %vm2006, %v1873, %v2070
      %v2135 = vsel %vm2007, %v1875, %v2071
      %v2136 = vsel %vm2008, %v1877, %v2072
      %v2137 = vsel %vm2009, %v1881, %v2073
      %v2138 = vsel %vm2010, %v1883, %v2074
      %v2139 = vsel %vm2011, %v1885, %v2075
      %v2140 = vsel %vm2012, %v1887, %v2076
      %v2141 = vsel %vm2013, %v1891, %v2077
      %v2142 = vsel %vm2014, %v1893, %v2078
      %v2143 = vsel %vm2015, %v1895, %v2079
      %v2144 = vsel %vm2016, %v1897, %v2080
      %v2145 = vsel %vm2017, %v1901, %v2081
      %v2146 = vsel %vm2018, %v1903, %v2082
      %v2147 = vsel %vm2019, %v1905, %v2083
      %v2148 = vsel %vm2020, %v1907, %v2084
      %v2149 = vsel %vm2021, %v1911, %v2085
      %v2150 = vsel %vm2022, %v1913, %v2086
      %v2151 = vsel %vm2023, %v1915, %v2087
      %v2152 = vsel %vm2024, %v1917, %v2088
      %v2153 = vsel %vm2025, %v1921, %v2089
      %v2154 = vsel %vm2026, %v1923, %v2090
      %v2155 = vsel %vm2027, %v1925, %v2091
      %v2156 = vsel %vm2028, %v1927, %v2092
      %v2157 = vsel %vm2029, %v1931, %v2093
      %v2158 = vsel %vm2030, %v1933, %v2094
      %v2159 = vsel %vm2031, %v1935, %v2095
      %v2160 = vsel %vm2032, %v1937, %v2096
      %v2161 = vsel %vm2033, %v1941, %v2097
      %v2162 = vsel %vm2034, %v1943, %v2098
      %v2163 = vsel %vm2035, %v1945, %v2099
      %v2164 = vsel %vm2036, %v1947, %v2100
      %v2165 = vsel %vm2037, %v1951, %v2101
      %v2166 = vsel %vm2038, %v1953, %v2102
      %v2167 = vsel %vm2039, %v1955, %v2103
      %v2168 = vsel %vm2040, %v1957, %v2104
      %v2169 = vsel %vm2041, %v1961, %v2105
      %v2170 = vsel %vm2042, %v1963, %v2106
      %v2171 = vsel %vm2043, %v1965, %v2107
      %v2172 = vsel %vm2044, %v1967, %v2108
      %v2173 = vsel %vm2045, %v1971, %v2109
      %v2174 = vsel %vm2046, %v1973, %v2110
      %v2175 = vsel %vm2047, %v1975, %v2111
      %v2176 = vsel %vm2048, %v1977, %v2112
      %v2177 = vsel %vm2049, %v1981, %v2113
      %v2178 = vsel %vm2050, %v1983, %v2114
      %v2179 = vsel %vm2051, %v1985, %v2115
      %v2180 = vsel %vm2052, %v1987, %v2116
      %v2181 = vpack.c.bf16 %v2119, %v2117
      %v2182 = vpack.c.bf16 %v2120, %v2118
      %v2183 = vpack.c.bf16 %v2123, %v2121
      %v2184 = vpack.c.bf16 %v2124, %v2122
      %v2185 = vpack.c.bf16 %v2127, %v2125
      %v2186 = vpack.c.bf16 %v2128, %v2126
      %v2187 = vpack.c.bf16 %v2131, %v2129
      %v2188 = vpack.c.bf16 %v2132, %v2130
      %v2189 = vpack.c.bf16 %v2135, %v2133
      %v2190 = vpack.c.bf16 %v2136, %v2134
      %v2191 = vpack.c.bf16 %v2139, %v2137
      %v2192 = vpack.c.bf16 %v2140, %v2138
      %v2193 = vpack.c.bf16 %v2143, %v2141
      %v2194 = vpack.c.bf16 %v2144, %v2142
      %v2195 = vpack.c.bf16 %v2147, %v2145
      %v2196 = vpack.c.bf16 %v2148, %v2146
      %v2197 = vpack.c.bf16 %v2151, %v2149
      %v2198 = vpack.c.bf16 %v2152, %v2150
      %v2199 = vpack.c.bf16 %v2155, %v2153
      %v2200 = vpack.c.bf16 %v2156, %v2154
      %v2201 = vpack.c.bf16 %v2159, %v2157
      %v2202 = vpack.c.bf16 %v2160, %v2158
      %v2203 = vpack.c.bf16 %v2163, %v2161
      %v2204 = vpack.c.bf16 %v2164, %v2162
      %v2205 = vpack.c.bf16 %v2167, %v2165
      %v2206 = vpack.c.bf16 %v2168, %v2166
      %v2207 = vpack.c.bf16 %v2171, %v2169
      %v2208 = vpack.c.bf16 %v2172, %v2170
      %v2209 = vpack.c.bf16 %v2175, %v2173
      %v2210 = vpack.c.bf16 %v2176, %v2174
      %v2211 = vpack.c.bf16 %v2179, %v2177
      %v2212 = vpack.c.bf16 %v2180, %v2178
      %v2213 = vld [vmem:[%s3] sm:$0xf]
      %v2214 = vld [vmem:[%s3 + $0x4] sm:$0xf]
      %v2215 = vld [vmem:[%s3 + $0x8] sm:$0xf]
      %v2216 = vld [vmem:[%s3 + $0xc] sm:$0xf]
      %v2217 = vld [vmem:[%s3 + $0x10] sm:$0xf]
      %v2218 = vld [vmem:[%s3 + $0x14] sm:$0xf]
      %v2219 = vld [vmem:[%s3 + $0x18] sm:$0xf]
      %v2220 = vld [vmem:[%s3 + $0x1c] sm:$0xf]
      %v2221 = vld [vmem:[%s3 + $0x20] sm:$0xf]
      %v2222 = vld [vmem:[%s3 + $0x24] sm:$0xf]
      %v2223 = vld [vmem:[%s3 + $0x28] sm:$0xf]
      %v2224 = vld [vmem:[%s3 + $0x2c] sm:$0xf]
      %v2225 = vld [vmem:[%s3 + $0x30] sm:$0xf]
      %v2226 = vld [vmem:[%s3 + $0x34] sm:$0xf]
      %v2227 = vld [vmem:[%s3 + $0x38] sm:$0xf]
      %v2228 = vld [vmem:[%s3 + $0x3c] sm:$0xf]
      %v2229 = vld [vmem:[%s3 + $0x40] sm:$0xf]
      %v2230 = vld [vmem:[%s3 + $0x44] sm:$0xf]
      %v2231 = vld [vmem:[%s3 + $0x48] sm:$0xf]
      %v2232 = vld [vmem:[%s3 + $0x4c] sm:$0xf]
      %v2233 = vld [vmem:[%s3 + $0x50] sm:$0xf]
      %v2234 = vld [vmem:[%s3 + $0x54] sm:$0xf]
      %v2235 = vld [vmem:[%s3 + $0x58] sm:$0xf]
      %v2236 = vld [vmem:[%s3 + $0x5c] sm:$0xf]
      %v2237 = vld [vmem:[%s3 + $0x60] sm:$0xf]
      %v2238 = vld [vmem:[%s3 + $0x64] sm:$0xf]
      %v2239 = vld [vmem:[%s3 + $0x68] sm:$0xf]
      %v2240 = vld [vmem:[%s3 + $0x6c] sm:$0xf]
      %v2241 = vld [vmem:[%s3 + $0x70] sm:$0xf]
      %v2242 = vld [vmem:[%s3 + $0x74] sm:$0xf]
      %v2243 = vld [vmem:[%s3 + $0x78] sm:$0xf]
      %v2244 = vld [vmem:[%s3 + $0x7c] sm:$0xf]
      %v2245 = vld [vmem:[%s4] sm:$0x1]
      %v2247 = vlaneseq
      %v2248 = vshrl.u32 %v2247, 7
      %v2249 = vsub.s32 0, %v2248
      %v2250 = vrot.slane %v2245, %v2249
      %v2284 = vunpack.c.l.b16 %v2213
      %v2285 = vunpack.c.l.b16 %v2214
      %v2286 = vunpack.c.l.b16 %v2215
      %v2287 = vunpack.c.l.b16 %v2216
      %v2288 = vunpack.c.l.b16 %v2217
      %v2289 = vunpack.c.l.b16 %v2218
      %v2290 = vunpack.c.l.b16 %v2219
      %v2291 = vunpack.c.l.b16 %v2220
      %v2292 = vunpack.c.l.b16 %v2221
      %v2293 = vunpack.c.l.b16 %v2222
      %v2294 = vunpack.c.l.b16 %v2223
      %v2295 = vunpack.c.l.b16 %v2224
      %v2296 = vunpack.c.l.b16 %v2225
      %v2297 = vunpack.c.l.b16 %v2226
      %v2298 = vunpack.c.l.b16 %v2227
      %v2299 = vunpack.c.l.b16 %v2228
      %v2300 = vunpack.c.l.b16 %v2229
      %v2301 = vunpack.c.l.b16 %v2230
      %v2302 = vunpack.c.l.b16 %v2231
      %v2303 = vunpack.c.l.b16 %v2232
      %v2304 = vunpack.c.l.b16 %v2233
      %v2305 = vunpack.c.l.b16 %v2234
      %v2306 = vunpack.c.l.b16 %v2235
      %v2307 = vunpack.c.l.b16 %v2236
      %v2308 = vunpack.c.l.b16 %v2237
      %v2309 = vunpack.c.l.b16 %v2238
      %v2310 = vunpack.c.l.b16 %v2239
      %v2311 = vunpack.c.l.b16 %v2240
      %v2312 = vunpack.c.l.b16 %v2241
      %v2313 = vunpack.c.l.b16 %v2242
      %v2314 = vunpack.c.l.b16 %v2243
      %v2315 = vunpack.c.l.b16 %v2244
      %v2316 = vpack.c.b16 %v2285, %v2284
      %v2317 = vpack.c.b16 %v2287, %v2286
      %v2318 = vpack.c.b16 %v2289, %v2288
      %v2319 = vpack.c.b16 %v2291, %v2290
      %v2320 = vpack.c.b16 %v2293, %v2292
      %v2321 = vpack.c.b16 %v2295, %v2294
      %v2322 = vpack.c.b16 %v2297, %v2296
      %v2323 = vpack.c.b16 %v2299, %v2298
      %v2324 = vpack.c.b16 %v2301, %v2300
      %v2325 = vpack.c.b16 %v2303, %v2302
      %v2326 = vpack.c.b16 %v2305, %v2304
      %v2327 = vpack.c.b16 %v2307, %v2306
      %v2328 = vpack.c.b16 %v2309, %v2308
      %v2329 = vpack.c.b16 %v2311, %v2310
      %v2330 = vpack.c.b16 %v2313, %v2312
      %v2331 = vpack.c.b16 %v2315, %v2314
      %2348 = vmatprep.subr.bf16.mxu0 0
      %2349 = vmatpush1.bf16.msra.mxu0 %v2323
      %2350 = vmatprep.subr.bf16.mxu0 0
      %2351 = vmatpush1.bf16.msra.mxu0 %v2322
      %2352 = vmatprep.subr.bf16.mxu0 0
      %2353 = vmatpush1.bf16.msra.mxu0 %v2321
      %2354 = vmatprep.subr.bf16.mxu0 0
      %2355 = vmatpush1.bf16.msra.mxu0 %v2320
      %2356 = vmatprep.subr.bf16.mxu0 0
      %2357 = vmatpush1.bf16.msra.mxu0 %v2319
      %2358 = vmatprep.subr.bf16.mxu0 0
      %2359 = vmatpush1.bf16.msra.mxu0 %v2318
      %2360 = vmatprep.subr.bf16.mxu0 0
      %2361 = vmatpush1.bf16.msra.mxu0 %v2317
      %2362 = vmatprep.subr.bf16.mxu0 0
      %2363 = vmatpush1.bf16.msra.mxu0 %v2316
      %2364 = vmatprep.subr.bf16.mxu0 0
      %2365 = vmatpush2.bf16.msra.mxu0 %v2331
      %2366 = vmatprep.subr.bf16.mxu0 0
      %2367 = vmatpush2.bf16.msra.mxu0 %v2330
      %2368 = vmatprep.subr.bf16.mxu0 0
      %2369 = vmatpush2.bf16.msra.mxu0 %v2329
      %2370 = vmatprep.subr.bf16.mxu0 0
      %2371 = vmatpush2.bf16.msra.mxu0 %v2328
      %2372 = vmatprep.subr.bf16.mxu0 0
      %2373 = vmatpush2.bf16.msra.mxu0 %v2327
      %2374 = vmatprep.subr.bf16.mxu0 0
      %2375 = vmatpush2.bf16.msra.mxu0 %v2326
      %2376 = vmatprep.subr.bf16.mxu0 0
      %2377 = vmatpush2.bf16.msra.mxu0 %v2325
      %2378 = vmatprep.subr.bf16.mxu0 0
      %2379 = vmatpush2.bf16.msra.mxu0 %v2324
      %2380 = vmatprep.mubr.bf16.mxu0 %v2182
      %2381 = vmatmul.mubr.bf16.gmra.mxu0 %v2181
      %v2382 = vpop.f32.mrf.mxu0
      %v2383 = vadd.f32 %v2250, %v2382
      %v2384 = vpop.f32.mrf.mxu0
      %v2385 = vpop.f32.mrf.mxu0
      %v2386 = vadd.f32 %v2250, %v2385
      %v2387 = vpop.f32.mrf.mxu0
      %2388 = vmatprep.mubr.bf16.mxu0 %v2184
      %2389 = vmatmul.mubr.bf16.gmra.mxu0 %v2183
      %v2390 = vpop.f32.mrf.mxu0
      %v2391 = vadd.f32 %v2250, %v2390
      %v2392 = vpop.f32.mrf.mxu0
      %v2393 = vpop.f32.mrf.mxu0
      %v2394 = vadd.f32 %v2250, %v2393
      %v2395 = vpop.f32.mrf.mxu0
      %2396 = vmatprep.mubr.bf16.mxu0 %v2186
      %2397 = vmatmul.mubr.bf16.gmra.mxu0 %v2185
      %v2398 = vpop.f32.mrf.mxu0
      %v2399 = vadd.f32 %v2250, %v2398
      %v2400 = vpop.f32.mrf.mxu0
      %v2401 = vpop.f32.mrf.mxu0
      %v2402 = vadd.f32 %v2250, %v2401
      %v2403 = vpop.f32.mrf.mxu0
      %2404 = vmatprep.mubr.bf16.mxu0 %v2188
      %2405 = vmatmul.mubr.bf16.gmra.mxu0 %v2187
      %v2406 = vpop.f32.mrf.mxu0
      %v2407 = vadd.f32 %v2250, %v2406
      %v2408 = vpop.f32.mrf.mxu0
      %v2409 = vpop.f32.mrf.mxu0
      %v2410 = vadd.f32 %v2250, %v2409
      %v2411 = vpop.f32.mrf.mxu0
      %2412 = vmatprep.mubr.bf16.mxu0 %v2190
      %2413 = vmatmul.mubr.bf16.gmra.mxu0 %v2189
      %v2414 = vpop.f32.mrf.mxu0
      %v2415 = vadd.f32 %v2250, %v2414
      %v2416 = vpop.f32.mrf.mxu0
      %v2417 = vpop.f32.mrf.mxu0
      %v2418 = vadd.f32 %v2250, %v2417
      %v2419 = vpop.f32.mrf.mxu0
      %2420 = vmatprep.mubr.bf16.mxu0 %v2192
      %2421 = vmatmul.mubr.bf16.gmra.mxu0 %v2191
      %v2422 = vpop.f32.mrf.mxu0
      %v2423 = vadd.f32 %v2250, %v2422
      %v2424 = vpop.f32.mrf.mxu0
      %v2425 = vpop.f32.mrf.mxu0
      %v2426 = vadd.f32 %v2250, %v2425
      %v2427 = vpop.f32.mrf.mxu0
      %2428 = vmatprep.mubr.bf16.mxu0 %v2194
      %2429 = vmatmul.mubr.bf16.gmra.mxu0 %v2193
      %v2430 = vpop.f32.mrf.mxu0
      %v2431 = vadd.f32 %v2250, %v2430
      %v2432 = vpop.f32.mrf.mxu0
      %v2433 = vpop.f32.mrf.mxu0
      %v2434 = vadd.f32 %v2250, %v2433
      %v2435 = vpop.f32.mrf.mxu0
      %2436 = vmatprep.mubr.bf16.mxu0 %v2196
      %2437 = vmatmul.mubr.bf16.gmra.mxu0 %v2195
      %v2438 = vpop.f32.mrf.mxu0
      %v2439 = vadd.f32 %v2250, %v2438
      %v2440 = vpop.f32.mrf.mxu0
      %v2441 = vpop.f32.mrf.mxu0
      %v2442 = vadd.f32 %v2250, %v2441
      %v2443 = vpop.f32.mrf.mxu0
      %2444 = vmatprep.mubr.bf16.mxu0 %v2198
      %2445 = vmatmul.mubr.bf16.gmra.mxu0 %v2197
      %v2446 = vpop.f32.mrf.mxu0
      %v2447 = vadd.f32 %v2250, %v2446
      %v2448 = vpop.f32.mrf.mxu0
      %v2449 = vpop.f32.mrf.mxu0
      %v2450 = vadd.f32 %v2250, %v2449
      %v2451 = vpop.f32.mrf.mxu0
      %2452 = vmatprep.mubr.bf16.mxu0 %v2200
      %2453 = vmatmul.mubr.bf16.gmra.mxu0 %v2199
      %v2454 = vpop.f32.mrf.mxu0
      %v2455 = vadd.f32 %v2250, %v2454
      %v2456 = vpop.f32.mrf.mxu0
      %v2457 = vpop.f32.mrf.mxu0
      %v2458 = vadd.f32 %v2250, %v2457
      %v2459 = vpop.f32.mrf.mxu0
      %2460 = vmatprep.mubr.bf16.mxu0 %v2202
      %2461 = vmatmul.mubr.bf16.gmra.mxu0 %v2201
      %v2462 = vpop.f32.mrf.mxu0
      %v2463 = vadd.f32 %v2250, %v2462
      %v2464 = vpop.f32.mrf.mxu0
      %v2465 = vpop.f32.mrf.mxu0
      %v2466 = vadd.f32 %v2250, %v2465
      %v2467 = vpop.f32.mrf.mxu0
      %2468 = vmatprep.mubr.bf16.mxu0 %v2204
      %2469 = vmatmul.mubr.bf16.gmra.mxu0 %v2203
      %v2470 = vpop.f32.mrf.mxu0
      %v2471 = vadd.f32 %v2250, %v2470
      %v2472 = vpop.f32.mrf.mxu0
      %v2473 = vpop.f32.mrf.mxu0
      %v2474 = vadd.f32 %v2250, %v2473
      %v2475 = vpop.f32.mrf.mxu0
      %2476 = vmatprep.mubr.bf16.mxu0 %v2206
      %2477 = vmatmul.mubr.bf16.gmra.mxu0 %v2205
      %v2478 = vpop.f32.mrf.mxu0
      %v2479 = vadd.f32 %v2250, %v2478
      %v2480 = vpop.f32.mrf.mxu0
      %v2481 = vpop.f32.mrf.mxu0
      %v2482 = vadd.f32 %v2250, %v2481
      %v2483 = vpop.f32.mrf.mxu0
      %2484 = vmatprep.mubr.bf16.mxu0 %v2208
      %2485 = vmatmul.mubr.bf16.gmra.mxu0 %v2207
      %v2486 = vpop.f32.mrf.mxu0
      %v2487 = vadd.f32 %v2250, %v2486
      %v2488 = vpop.f32.mrf.mxu0
      %v2489 = vpop.f32.mrf.mxu0
      %v2490 = vadd.f32 %v2250, %v2489
      %v2491 = vpop.f32.mrf.mxu0
      %2492 = vmatprep.mubr.bf16.mxu0 %v2210
      %2493 = vmatmul.mubr.bf16.gmra.mxu0 %v2209
      %v2494 = vpop.f32.mrf.mxu0
      %v2495 = vadd.f32 %v2250, %v2494
      %v2496 = vpop.f32.mrf.mxu0
      %v2497 = vpop.f32.mrf.mxu0
      %v2498 = vadd.f32 %v2250, %v2497
      %v2499 = vpop.f32.mrf.mxu0
      %2500 = vmatprep.mubr.bf16.mxu0 %v2212
      %2501 = vmatmul.mubr.bf16.gmra.mxu0 %v2211
      %v2502 = vpop.f32.mrf.mxu0
      %v2503 = vadd.f32 %v2250, %v2502
      %v2504 = vpop.f32.mrf.mxu0
      %v2505 = vpop.f32.mrf.mxu0
      %v2506 = vadd.f32 %v2250, %v2505
      %v2507 = vpop.f32.mrf.mxu0
      %2508 = vdwg.mxu0
      %vm2509 = vcmp.gt.f32.partialorder %v2383, 0.0
      %vm2510 = vcmp.gt.f32.partialorder %v2386, 0.0
      %vm2511 = vcmp.gt.f32.partialorder %v2391, 0.0
      %vm2512 = vcmp.gt.f32.partialorder %v2394, 0.0
      %vm2513 = vcmp.gt.f32.partialorder %v2399, 0.0
      %vm2514 = vcmp.gt.f32.partialorder %v2402, 0.0
      %vm2515 = vcmp.gt.f32.partialorder %v2407, 0.0
      %vm2516 = vcmp.gt.f32.partialorder %v2410, 0.0
      %vm2517 = vcmp.gt.f32.partialorder %v2415, 0.0
      %vm2518 = vcmp.gt.f32.partialorder %v2418, 0.0
      %vm2519 = vcmp.gt.f32.partialorder %v2423, 0.0
      %vm2520 = vcmp.gt.f32.partialorder %v2426, 0.0
      %vm2521 = vcmp.gt.f32.partialorder %v2431, 0.0
      %vm2522 = vcmp.gt.f32.partialorder %v2434, 0.0
      %vm2523 = vcmp.gt.f32.partialorder %v2439, 0.0
      %vm2524 = vcmp.gt.f32.partialorder %v2442, 0.0
      %vm2525 = vcmp.gt.f32.partialorder %v2447, 0.0
      %vm2526 = vcmp.gt.f32.partialorder %v2450, 0.0
      %vm2527 = vcmp.gt.f32.partialorder %v2455, 0.0
      %vm2528 = vcmp.gt.f32.partialorder %v2458, 0.0
      %vm2529 = vcmp.gt.f32.partialorder %v2463, 0.0
      %vm2530 = vcmp.gt.f32.partialorder %v2466, 0.0
      %vm2531 = vcmp.gt.f32.partialorder %v2471, 0.0
      %vm2532 = vcmp.gt.f32.partialorder %v2474, 0.0
      %vm2533 = vcmp.gt.f32.partialorder %v2479, 0.0
      %vm2534 = vcmp.gt.f32.partialorder %v2482, 0.0
      %vm2535 = vcmp.gt.f32.partialorder %v2487, 0.0
      %vm2536 = vcmp.gt.f32.partialorder %v2490, 0.0
      %vm2537 = vcmp.gt.f32.partialorder %v2495, 0.0
      %vm2538 = vcmp.gt.f32.partialorder %v2498, 0.0
      %vm2539 = vcmp.gt.f32.partialorder %v2503, 0.0
      %vm2540 = vcmp.gt.f32.partialorder %v2506, 0.0
      %v2541 = vmul.f32 %v2383, 0.2
      %v2542 = vmul.f32 %v2386, 0.2
      %v2543 = vmul.f32 %v2391, 0.2
      %v2544 = vmul.f32 %v2394, 0.2
      %v2545 = vmul.f32 %v2399, 0.2
      %v2546 = vmul.f32 %v2402, 0.2
      %v2547 = vmul.f32 %v2407, 0.2
      %v2548 = vmul.f32 %v2410, 0.2
      %v2549 = vmul.f32 %v2415, 0.2
      %v2550 = vmul.f32 %v2418, 0.2
      %v2551 = vmul.f32 %v2423, 0.2
      %v2552 = vmul.f32 %v2426, 0.2
      %v2553 = vmul.f32 %v2431, 0.2
      %v2554 = vmul.f32 %v2434, 0.2
      %v2555 = vmul.f32 %v2439, 0.2
      %v2556 = vmul.f32 %v2442, 0.2
      %v2557 = vmul.f32 %v2447, 0.2
      %v2558 = vmul.f32 %v2450, 0.2
      %v2559 = vmul.f32 %v2455, 0.2
      %v2560 = vmul.f32 %v2458, 0.2
      %v2561 = vmul.f32 %v2463, 0.2
      %v2562 = vmul.f32 %v2466, 0.2
      %v2563 = vmul.f32 %v2471, 0.2
      %v2564 = vmul.f32 %v2474, 0.2
      %v2565 = vmul.f32 %v2479, 0.2
      %v2566 = vmul.f32 %v2482, 0.2
      %v2567 = vmul.f32 %v2487, 0.2
      %v2568 = vmul.f32 %v2490, 0.2
      %v2569 = vmul.f32 %v2495, 0.2
      %v2570 = vmul.f32 %v2498, 0.2
      %v2571 = vmul.f32 %v2503, 0.2
      %v2572 = vmul.f32 %v2506, 0.2
      %v2573 = vsel %vm2509, %v2383, %v2541
      %v2574 = vsel %vm2510, %v2386, %v2542
      %v2575 = vsel %vm2511, %v2391, %v2543
      %v2576 = vsel %vm2512, %v2394, %v2544
      %v2577 = vsel %vm2513, %v2399, %v2545
      %v2578 = vsel %vm2514, %v2402, %v2546
      %v2579 = vsel %vm2515, %v2407, %v2547
      %v2580 = vsel %vm2516, %v2410, %v2548
      %v2581 = vsel %vm2517, %v2415, %v2549
      %v2582 = vsel %vm2518, %v2418, %v2550
      %v2583 = vsel %vm2519, %v2423, %v2551
      %v2584 = vsel %vm2520, %v2426, %v2552
      %v2585 = vsel %vm2521, %v2431, %v2553
      %v2586 = vsel %vm2522, %v2434, %v2554
      %v2587 = vsel %vm2523, %v2439, %v2555
      %v2588 = vsel %vm2524, %v2442, %v2556
      %v2589 = vsel %vm2525, %v2447, %v2557
      %v2590 = vsel %vm2526, %v2450, %v2558
      %v2591 = vsel %vm2527, %v2455, %v2559
      %v2592 = vsel %vm2528, %v2458, %v2560
      %v2593 = vsel %vm2529, %v2463, %v2561
      %v2594 = vsel %vm2530, %v2466, %v2562
      %v2595 = vsel %vm2531, %v2471, %v2563
      %v2596 = vsel %vm2532, %v2474, %v2564
      %v2597 = vsel %vm2533, %v2479, %v2565
      %v2598 = vsel %vm2534, %v2482, %v2566
      %v2599 = vsel %vm2535, %v2487, %v2567
      %v2600 = vsel %vm2536, %v2490, %v2568
      %v2601 = vsel %vm2537, %v2495, %v2569
      %v2602 = vsel %vm2538, %v2498, %v2570
      %v2603 = vsel %vm2539, %v2503, %v2571
      %v2604 = vsel %vm2540, %v2506, %v2572
      %vm2605 = vcmask 261120
      %2606 = vst.msk [vmem:[%s229] sm:$0xff] %vm2605, %v2573
      %2607 = vst.msk [vmem:[%s229 + $0x8] sm:$0xff] %vm2605, %v2574
      %2608 = vst.msk [vmem:[%s229 + $0x10] sm:$0xff] %vm2605, %v2575
      %2609 = vst.msk [vmem:[%s229 + $0x18] sm:$0xff] %vm2605, %v2576
      %2610 = vst.msk [vmem:[%s229 + $0x20] sm:$0xff] %vm2605, %v2577
      %2611 = vst.msk [vmem:[%s229 + $0x28] sm:$0xff] %vm2605, %v2578
      %2612 = vst.msk [vmem:[%s229 + $0x30] sm:$0xff] %vm2605, %v2579
      %2613 = vst.msk [vmem:[%s229 + $0x38] sm:$0xff] %vm2605, %v2580
      %2614 = vst.msk [vmem:[%s229 + $0x40] sm:$0xff] %vm2605, %v2581
      %2615 = vst.msk [vmem:[%s229 + $0x48] sm:$0xff] %vm2605, %v2582
      %2616 = vst.msk [vmem:[%s229 + $0x50] sm:$0xff] %vm2605, %v2583
      %2617 = vst.msk [vmem:[%s229 + $0x58] sm:$0xff] %vm2605, %v2584
      %2618 = vst.msk [vmem:[%s229 + $0x60] sm:$0xff] %vm2605, %v2585
      %2619 = vst.msk [vmem:[%s229 + $0x68] sm:$0xff] %vm2605, %v2586
      %2620 = vst.msk [vmem:[%s229 + $0x70] sm:$0xff] %vm2605, %v2587
      %2621 = vst.msk [vmem:[%s229 + $0x78] sm:$0xff] %vm2605, %v2588
      %2622 = vst.msk [vmem:[%s229 + $0x80] sm:$0xff] %vm2605, %v2589
      %2623 = vst.msk [vmem:[%s229 + $0x88] sm:$0xff] %vm2605, %v2590
      %2624 = vst.msk [vmem:[%s229 + $0x90] sm:$0xff] %vm2605, %v2591
      %2625 = vst.msk [vmem:[%s229 + $0x98] sm:$0xff] %vm2605, %v2592
      %2626 = vst.msk [vmem:[%s229 + $0xa0] sm:$0xff] %vm2605, %v2593
      %2627 = vst.msk [vmem:[%s229 + $0xa8] sm:$0xff] %vm2605, %v2594
      %2628 = vst.msk [vmem:[%s229 + $0xb0] sm:$0xff] %vm2605, %v2595
      %2629 = vst.msk [vmem:[%s229 + $0xb8] sm:$0xff] %vm2605, %v2596
      %2630 = vst.msk [vmem:[%s229 + $0xc0] sm:$0xff] %vm2605, %v2597
      %2631 = vst.msk [vmem:[%s229 + $0xc8] sm:$0xff] %vm2605, %v2598
      %2632 = vst.msk [vmem:[%s229 + $0xd0] sm:$0xff] %vm2605, %v2599
      %2633 = vst.msk [vmem:[%s229 + $0xd8] sm:$0xff] %vm2605, %v2600
      %2634 = vst.msk [vmem:[%s229 + $0xe0] sm:$0xff] %vm2605, %v2601
      %2635 = vst.msk [vmem:[%s229 + $0xe8] sm:$0xff] %vm2605, %v2602
      %2636 = vst.msk [vmem:[%s229 + $0xf0] sm:$0xff] %vm2605, %v2603
      %2637 = vst.msk [vmem:[%s229 + $0xf8] sm:$0xff] %vm2605, %v2604
      %s2638 = smul.u32 32, %s16
      %p2639 = scmp.lt.s32.totalorder %s2638, 127
      %s2640 = scalar_select %p2639, %s2638, 127
      %s2641 = smul.addr %s2640, 8
      %s2642 = scalar_lea.vmem %s5, %s2641
      // Predicated region
      $region41: #{tpu_custom_call.1} parent=39 // pred_check
        %p2643 = pneg %p144
      $region42: #{tpu_custom_call.1} parent=39 // pred_check_branch
        %2645 = sbr.rel (%p2643) target = $region44
      $region43: #{tpu_custom_call.1} parent=39 // pred_region
        %s2646 = smul.u32 32, %s16
      $region44: #{tpu_custom_call.1} parent=39 // pred_fallthru
        _
    $region40: #{tpu_custom_call.1} parent=5 // pred_fallthru
      _
    %p2647 = scmp.le.s32.totalorder 2, %s11
    // Predicated region
    $region45: #{tpu_custom_call.1} parent=5 // pred_check
      %p2648 = pneg %p2647
    $region46: #{tpu_custom_call.1} parent=5 // pred_check_branch
      %2650 = sbr.rel (%p2648) target = $region48
    $region47: #{tpu_custom_call.1} parent=5 // pred_region
      %s2651 = ssub.s32 %s11, 2
      // Predicated region
      $region49: #{tpu_custom_call.1} parent=47 // pred_check
        %p2652 = pneg %p150
      $region50: #{tpu_custom_call.1} parent=47 // pred_check_branch
        %2654 = sbr.rel (%p2652) target = $region52
      $region51: #{tpu_custom_call.1} parent=47 // pred_region
        %s2655 = smul.u32 32, %s17
        %p2656 = scmp.lt.s32.totalorder %s2655, 127
        %s2657 = scalar_select %p2656, %s2655, 127
        %s2658 = smul.addr %s2657, 8
        %s2659 = scalar_lea.vmem %s5, %s2658
      $region52: #{tpu_custom_call.1} parent=47 // pred_fallthru
        _
    $region48: #{tpu_custom_call.1} parent=5 // pred_fallthru
      _
  $region6: #{tpu_custom_call.1} parent=0 // loop_footer
    %s15 = sadd.s32 1, %s11
  $region7: #{tpu_custom_call.1} parent=0 // loop_footer_branch
    %10 = sbr.rel target = $region3
  $region8: #{tpu_custom_call.1} parent=0 // loop_exit
    _

</llo_original>
